<compile_context>
chip_gen: v7x
topology: tpu7x:2x2x1
jax: 0.10.0
libtpu: 0.0.40
codegen_flags: <defaults>
</compile_context>

<pallas_src>
import jax
import jax.numpy as jnp
from jax.experimental import pallas as pl
from jax.experimental.pallas import tpu as pltpu

# Layer sizes of the autoencoder.
DIMS = [64, 32, 16, 8, 16, 32, 64]
_HIGHEST = jax.lax.Precision.HIGHEST


def _round_up(x, m):
    return ((x + m - 1) // m) * m


def _pick_tb(batch):
    """Pick the batch tile (sublane dim of the (TB, 64) blocks)."""
    if batch <= 512:
        # Tiny batches: one tile that just covers the batch (sublane multiple of 8).
        return max(8, _round_up(batch, 8))
    # Large batches: big tiles for HBM efficiency, but always >= 2 grid steps so the
    # "parallel" axis can be sharded across v7x's two TensorCores.  Cap at 4096 rows
    # (1 MiB/block) so double-buffered in+out blocks stay well under the v5e
    # default scoped-VMEM limit.
    return min(4096, _round_up(pl.cdiv(batch, 2), 256))


def _ae_kernel(x_ref, w_ref, b_ref, mean_ref, out_ref):
    # x_ref: (TB, 64) raw input rows -- the (x-mean)/std normalization is folded
    # into layer 1's weights/bias, the trailing *std into layer 6's.
    h = x_ref[...]

    for li in range(6):
        din, dout = DIMS[li], DIMS[li + 1]
        w = w_ref[li][:din, :dout]          # static slice of the VMEM-resident pack
        b = b_ref[li][:, :dout]             # (1, dout), broadcasts over rows
        y = jnp.dot(h, w, preferred_element_type=jnp.float32,
                    precision=_HIGHEST) + b
        h = jnp.maximum(y, 0.0)

    # Only the "+ mean" of the denormalization is left (can't fold across the ReLU).
    out_ref[...] = h + mean_ref[0, 0]


def fold_params(params, mean, std):
    """Fold (x-mean)/std into layer 1 and the *std denorm into layer 6.

    params: list of 6 (W, b) with W in PyTorch (out, in) orientation, b (out,).
    Assumes std > 0 (true for a data std-dev), so relu(z)*std == relu(z*std).
    """
    mean = jnp.float32(mean)
    std = jnp.float32(std)
    inv_std = 1.0 / std
    folded = []
    for li, (w, b) in enumerate(params):
        w = jnp.asarray(w, jnp.float32)           # (out, in)
        b = jnp.asarray(b, jnp.float32)           # (out,)
        if li == 0:
            # W @ ((x-mean)*inv_std) + b == (W*inv_std) @ x + (b - mean*inv_std*rowsum(W))
            b = b - mean * inv_std * jnp.sum(w, axis=1)
            w = w * inv_std
        if li == 5:
            # relu(W @ h + b) * std == relu((W*std) @ h + (b*std))   (std > 0)
            w = w * std
            b = b * std
        folded.append((w, b))
    return folded


def pack_params(folded):
    """Pack the six layers into one weight array and one bias array.

    wpack[li, :din, :dout] = W_li^T (so the kernel computes h @ W^T batch-major);
    bpack[li, 0, :dout]    = b_li.  Zero padding elsewhere.
    """
    wpack = jnp.zeros((6, 64, 64), jnp.float32)
    bpack = jnp.zeros((6, 1, 64), jnp.float32)
    for li, (w, b) in enumerate(folded):
        dout, din = w.shape
        wpack = wpack.at[li, :din, :dout].set(w.T)
        bpack = bpack.at[li, 0, :dout].set(b)
    return wpack, bpack


def ae_forward(features, params, mean, std):
    """features: (B, 1, 8, 8) f32.  Returns (B, 1, 8, 8) f32."""
    B = features.shape[0]
    # Free row-major reshape (no transpose, no pad): batch-major (B, 64).
    x = features.reshape(B, 64).astype(jnp.float32)

    tb = _pick_tb(B)
    num_tiles = pl.cdiv(B, tb)

    wpack, bpack = pack_params(fold_params(params, mean, std))
    mean2d = jnp.asarray(mean, jnp.float32).reshape(1, 1)

    # Memory-bound cost model: read + write 64 f32 per sample, ~10.7 kFLOP per sample.
    cost = pl.CostEstimate(
        flops=2 * 5376 * B,
        bytes_accessed=2 * B * 64 * 4 + int(wpack.size + bpack.size) * 4,
        transcendentals=0,
    )

    out = pl.pallas_call(
        _ae_kernel,
        out_shape=jax.ShapeDtypeStruct((B, 64), jnp.float32),
        grid=(num_tiles,),
        in_specs=[
            pl.BlockSpec((tb, 64), lambda i: (i, 0)),            # activations (batch-major)
            pl.BlockSpec(wpack.shape, lambda i: (0, 0, 0)),      # weights, VMEM-resident
            pl.BlockSpec(bpack.shape, lambda i: (0, 0, 0)),      # biases,  VMEM-resident
            pl.BlockSpec(memory_space=pltpu.MemorySpace.SMEM),   # mean scalar
        ],
        out_specs=pl.BlockSpec((tb, 64), lambda i: (i, 0)),
        compiler_params=pltpu.CompilerParams(
            dimension_semantics=("parallel",)),
        cost_estimate=cost,
    )(x, wpack, bpack, mean2d)

    return out.reshape(B, 1, 8, 8)


def init_params(key):
    """Deterministic init of the six Linear layers in PyTorch (out, in) layout."""
    params = []
    for li in range(6):
        fan_in, fan_out = DIMS[li], DIMS[li + 1]
        key, kw, kb = jax.random.split(key, 3)
        bound = 1.0 / jnp.sqrt(fan_in)
        w = jax.random.uniform(kw, (fan_out, fan_in), jnp.float32, -bound, bound)
        b = jax.random.uniform(kb, (fan_out,), jnp.float32, -bound, bound)
        params.append((w, b))
    return params


def ae_reference(features, params, mean, std):
    """Plain-JAX reference matching the PyTorch forward exactly (no folding)."""
    B = features.shape[0]
    h = ((features.astype(jnp.float32) - mean) / std).reshape(B, 64)
    for (w, b) in params:
        h = jnp.maximum(jnp.dot(h, w.T, precision=_HIGHEST) + b, 0.0)
    return h.reshape(B, 1, 8, 8) * std + mean


if __name__ == "__main__":
    key = jax.random.PRNGKey(0)
    kp, kx = jax.random.split(key)

    params = init_params(kp)
    # mean / std of the training data (scalar tensors in the original module; std > 0).
    mean = jnp.float32(0.5)
    std = jnp.float32(2.0)

    # Input: batch of 8 single-channel 8x8 images (flattens to 64 features).
    x = jax.random.normal(kx, (8, 1, 8, 8), jnp.float32)

    out = ae_forward(x, params, mean, std)
    out = jax.block_until_ready(out)

    ref = ae_reference(x, params, mean, std)
    assert out.shape == (8, 1, 8, 8)
    assert jnp.allclose(out, ref, atol=1e-4, rtol=1e-4), "mismatch vs reference"

    print("KERNEL_OK")
</pallas_src>

<mosaic_0001>
module attributes {stable_mosaic.version = 11 : i64} {
  func.func @_ae_kernel(%arg0: i32, %arg1: memref<8x64xf32, #tpu.memory_space<vmem>>, %arg2: memref<6x64x64xf32, #tpu.memory_space<vmem>>, %arg3: memref<6x1x64xf32, #tpu.memory_space<vmem>>, %arg4: memref<1x1xf32, #tpu.memory_space<smem>>, %arg5: memref<8x64xf32, #tpu.memory_space<vmem>>) attributes {dimension_semantics = [#tpu.dimension_semantics<parallel>], iteration_bounds = array<i64: 1>, scalar_prefetch = 0 : i64, scratch_operands = 0 : i64, tpu.core_type = #tpu.core_type<tc>, window_params = [{transform_indices = @transform_0, window_bounds = array<i64: 8, 64>}, {pipeline_mode = #tpu.pipeline_mode<synchronous>, transform_indices = @transform_1, window_bounds = array<i64: 6, 64, 64>}, {pipeline_mode = #tpu.pipeline_mode<synchronous>, transform_indices = @transform_2, window_bounds = array<i64: 6, 1, 64>}, {transform_indices = @transform_3, window_bounds = array<i64: 1, 1>}, {transform_indices = @transform_4, window_bounds = array<i64: 8, 64>}]} {
    %c0 = arith.constant 0 : index
    %c0_0 = arith.constant 0 : index
    %0 = vector.load %arg1[%c0, %c0_0] : memref<8x64xf32, #tpu.memory_space<vmem>>, vector<8x64xf32>
    %c0_1 = arith.constant 0 : index
    %c0_2 = arith.constant 0 : index
    %c0_3 = arith.constant 0 : index
    %1 = vector.load %arg2[%c0_1, %c0_2, %c0_3] : memref<6x64x64xf32, #tpu.memory_space<vmem>>, vector<1x64x64xf32>
    %2 = vector.shape_cast %1 : vector<1x64x64xf32> to vector<64x64xf32>
    %3 = vector.extract_strided_slice %2 {offsets = [0, 0], sizes = [64, 32], strides = [1, 1]} : vector<64x64xf32> to vector<64x32xf32>
    %c0_4 = arith.constant 0 : index
    %c0_5 = arith.constant 0 : index
    %c0_6 = arith.constant 0 : index
    %4 = vector.load %arg3[%c0_4, %c0_5, %c0_6] : memref<6x1x64xf32, #tpu.memory_space<vmem>>, vector<1x1x64xf32>
    %5 = vector.shape_cast %4 : vector<1x1x64xf32> to vector<1x64xf32>
    %6 = vector.extract_strided_slice %5 {offsets = [0, 0], sizes = [1, 32], strides = [1, 1]} : vector<1x64xf32> to vector<1x32xf32>
    %cst = arith.constant dense<0.000000e+00> : vector<8x32xf32>
    %7 = tpu.matmul %0, %3, %cst {dimension_numbers = #tpu.dot_dimension_numbers<[1], [0], [0], [1], [0, 0, 1, 1], [], []>, precision = #tpu.contract_precision<fp32>} : vector<8x64xf32>, vector<64x32xf32>, vector<8x32xf32> -> vector<8x32xf32>
    %8 = vector.broadcast %6 : vector<1x32xf32> to vector<8x32xf32>
    %9 = arith.addf %7, %8 : vector<8x32xf32>
    %cst_7 = arith.constant 0.000000e+00 : f32
    %10 = vector.broadcast %cst_7 : f32 to vector<8x32xf32>
    %11 = arith.maximumf %9, %10 : vector<8x32xf32>
    %c1 = arith.constant 1 : index
    %c0_8 = arith.constant 0 : index
    %c0_9 = arith.constant 0 : index
    %12 = vector.load %arg2[%c1, %c0_8, %c0_9] : memref<6x64x64xf32, #tpu.memory_space<vmem>>, vector<1x64x64xf32>
    %13 = vector.shape_cast %12 : vector<1x64x64xf32> to vector<64x64xf32>
    %14 = vector.extract_strided_slice %13 {offsets = [0, 0], sizes = [32, 16], strides = [1, 1]} : vector<64x64xf32> to vector<32x16xf32>
    %c1_10 = arith.constant 1 : index
    %c0_11 = arith.constant 0 : index
    %c0_12 = arith.constant 0 : index
    %15 = vector.load %arg3[%c1_10, %c0_11, %c0_12] : memref<6x1x64xf32, #tpu.memory_space<vmem>>, vector<1x1x64xf32>
    %16 = vector.shape_cast %15 : vector<1x1x64xf32> to vector<1x64xf32>
    %17 = vector.extract_strided_slice %16 {offsets = [0, 0], sizes = [1, 16], strides = [1, 1]} : vector<1x64xf32> to vector<1x16xf32>
    %cst_13 = arith.constant dense<0.000000e+00> : vector<8x16xf32>
    %18 = tpu.matmul %11, %14, %cst_13 {dimension_numbers = #tpu.dot_dimension_numbers<[1], [0], [0], [1], [0, 0, 1, 1], [], []>, precision = #tpu.contract_precision<fp32>} : vector<8x32xf32>, vector<32x16xf32>, vector<8x16xf32> -> vector<8x16xf32>
    %19 = vector.broadcast %17 : vector<1x16xf32> to vector<8x16xf32>
    %20 = arith.addf %18, %19 : vector<8x16xf32>
    %cst_14 = arith.constant 0.000000e+00 : f32
    %21 = vector.broadcast %cst_14 : f32 to vector<8x16xf32>
    %22 = arith.maximumf %20, %21 : vector<8x16xf32>
    %c2 = arith.constant 2 : index
    %c0_15 = arith.constant 0 : index
    %c0_16 = arith.constant 0 : index
    %23 = vector.load %arg2[%c2, %c0_15, %c0_16] : memref<6x64x64xf32, #tpu.memory_space<vmem>>, vector<1x64x64xf32>
    %24 = vector.shape_cast %23 : vector<1x64x64xf32> to vector<64x64xf32>
    %25 = vector.extract_strided_slice %24 {offsets = [0, 0], sizes = [16, 8], strides = [1, 1]} : vector<64x64xf32> to vector<16x8xf32>
    %c2_17 = arith.constant 2 : index
    %c0_18 = arith.constant 0 : index
    %c0_19 = arith.constant 0 : index
    %26 = vector.load %arg3[%c2_17, %c0_18, %c0_19] : memref<6x1x64xf32, #tpu.memory_space<vmem>>, vector<1x1x64xf32>
    %27 = vector.shape_cast %26 : vector<1x1x64xf32> to vector<1x64xf32>
    %28 = vector.extract_strided_slice %27 {offsets = [0, 0], sizes = [1, 8], strides = [1, 1]} : vector<1x64xf32> to vector<1x8xf32>
    %cst_20 = arith.constant dense<0.000000e+00> : vector<8x8xf32>
    %29 = tpu.matmul %22, %25, %cst_20 {dimension_numbers = #tpu.dot_dimension_numbers<[1], [0], [0], [1], [0, 0, 1, 1], [], []>, precision = #tpu.contract_precision<fp32>} : vector<8x16xf32>, vector<16x8xf32>, vector<8x8xf32> -> vector<8x8xf32>
    %30 = vector.broadcast %28 : vector<1x8xf32> to vector<8x8xf32>
    %31 = arith.addf %29, %30 : vector<8x8xf32>
    %cst_21 = arith.constant 0.000000e+00 : f32
    %32 = vector.broadcast %cst_21 : f32 to vector<8x8xf32>
    %33 = arith.maximumf %31, %32 : vector<8x8xf32>
    %c3 = arith.constant 3 : index
    %c0_22 = arith.constant 0 : index
    %c0_23 = arith.constant 0 : index
    %34 = vector.load %arg2[%c3, %c0_22, %c0_23] : memref<6x64x64xf32, #tpu.memory_space<vmem>>, vector<1x64x64xf32>
    %35 = vector.shape_cast %34 : vector<1x64x64xf32> to vector<64x64xf32>
    %36 = vector.extract_strided_slice %35 {offsets = [0, 0], sizes = [8, 16], strides = [1, 1]} : vector<64x64xf32> to vector<8x16xf32>
    %c3_24 = arith.constant 3 : index
    %c0_25 = arith.constant 0 : index
    %c0_26 = arith.constant 0 : index
    %37 = vector.load %arg3[%c3_24, %c0_25, %c0_26] : memref<6x1x64xf32, #tpu.memory_space<vmem>>, vector<1x1x64xf32>
    %38 = vector.shape_cast %37 : vector<1x1x64xf32> to vector<1x64xf32>
    %39 = vector.extract_strided_slice %38 {offsets = [0, 0], sizes = [1, 16], strides = [1, 1]} : vector<1x64xf32> to vector<1x16xf32>
    %cst_27 = arith.constant dense<0.000000e+00> : vector<8x16xf32>
    %40 = tpu.matmul %33, %36, %cst_27 {dimension_numbers = #tpu.dot_dimension_numbers<[1], [0], [0], [1], [0, 0, 1, 1], [], []>, precision = #tpu.contract_precision<fp32>} : vector<8x8xf32>, vector<8x16xf32>, vector<8x16xf32> -> vector<8x16xf32>
    %41 = vector.broadcast %39 : vector<1x16xf32> to vector<8x16xf32>
    %42 = arith.addf %40, %41 : vector<8x16xf32>
    %cst_28 = arith.constant 0.000000e+00 : f32
    %43 = vector.broadcast %cst_28 : f32 to vector<8x16xf32>
    %44 = arith.maximumf %42, %43 : vector<8x16xf32>
    %c4 = arith.constant 4 : index
    %c0_29 = arith.constant 0 : index
    %c0_30 = arith.constant 0 : index
    %45 = vector.load %arg2[%c4, %c0_29, %c0_30] : memref<6x64x64xf32, #tpu.memory_space<vmem>>, vector<1x64x64xf32>
    %46 = vector.shape_cast %45 : vector<1x64x64xf32> to vector<64x64xf32>
    %47 = vector.extract_strided_slice %46 {offsets = [0, 0], sizes = [16, 32], strides = [1, 1]} : vector<64x64xf32> to vector<16x32xf32>
    %c4_31 = arith.constant 4 : index
    %c0_32 = arith.constant 0 : index
    %c0_33 = arith.constant 0 : index
    %48 = vector.load %arg3[%c4_31, %c0_32, %c0_33] : memref<6x1x64xf32, #tpu.memory_space<vmem>>, vector<1x1x64xf32>
    %49 = vector.shape_cast %48 : vector<1x1x64xf32> to vector<1x64xf32>
    %50 = vector.extract_strided_slice %49 {offsets = [0, 0], sizes = [1, 32], strides = [1, 1]} : vector<1x64xf32> to vector<1x32xf32>
    %cst_34 = arith.constant dense<0.000000e+00> : vector<8x32xf32>
    %51 = tpu.matmul %44, %47, %cst_34 {dimension_numbers = #tpu.dot_dimension_numbers<[1], [0], [0], [1], [0, 0, 1, 1], [], []>, precision = #tpu.contract_precision<fp32>} : vector<8x16xf32>, vector<16x32xf32>, vector<8x32xf32> -> vector<8x32xf32>
    %52 = vector.broadcast %50 : vector<1x32xf32> to vector<8x32xf32>
    %53 = arith.addf %51, %52 : vector<8x32xf32>
    %cst_35 = arith.constant 0.000000e+00 : f32
    %54 = vector.broadcast %cst_35 : f32 to vector<8x32xf32>
    %55 = arith.maximumf %53, %54 : vector<8x32xf32>
    %c5 = arith.constant 5 : index
    %c0_36 = arith.constant 0 : index
    %c0_37 = arith.constant 0 : index
    %56 = vector.load %arg2[%c5, %c0_36, %c0_37] : memref<6x64x64xf32, #tpu.memory_space<vmem>>, vector<1x64x64xf32>
    %57 = vector.shape_cast %56 : vector<1x64x64xf32> to vector<64x64xf32>
    %58 = vector.extract_strided_slice %57 {offsets = [0, 0], sizes = [32, 64], strides = [1, 1]} : vector<64x64xf32> to vector<32x64xf32>
    %c5_38 = arith.constant 5 : index
    %c0_39 = arith.constant 0 : index
    %c0_40 = arith.constant 0 : index
    %59 = vector.load %arg3[%c5_38, %c0_39, %c0_40] : memref<6x1x64xf32, #tpu.memory_space<vmem>>, vector<1x1x64xf32>
    %60 = vector.shape_cast %59 : vector<1x1x64xf32> to vector<1x64xf32>
    %cst_41 = arith.constant dense<0.000000e+00> : vector<8x64xf32>
    %61 = tpu.matmul %55, %58, %cst_41 {dimension_numbers = #tpu.dot_dimension_numbers<[1], [0], [0], [1], [0, 0, 1, 1], [], []>, precision = #tpu.contract_precision<fp32>} : vector<8x32xf32>, vector<32x64xf32>, vector<8x64xf32> -> vector<8x64xf32>
    %62 = vector.broadcast %60 : vector<1x64xf32> to vector<8x64xf32>
    %63 = arith.addf %61, %62 : vector<8x64xf32>
    %cst_42 = arith.constant 0.000000e+00 : f32
    %64 = vector.broadcast %cst_42 : f32 to vector<8x64xf32>
    %65 = arith.maximumf %63, %64 : vector<8x64xf32>
    %c0_43 = arith.constant 0 : index
    %c0_44 = arith.constant 0 : index
    %66 = memref.load %arg4[%c0_43, %c0_44] : memref<1x1xf32, #tpu.memory_space<smem>>
    %67 = vector.broadcast %66 : f32 to vector<8x64xf32>
    %68 = arith.addf %65, %67 : vector<8x64xf32>
    %c0_45 = arith.constant 0 : index
    %c0_46 = arith.constant 0 : index
    %69 = vector.load %arg5[%c0_45, %c0_46] : memref<8x64xf32, #tpu.memory_space<vmem>>, vector<8x64xf32>
    tpu.vector_store %arg5[%c0_45, %c0_46], %68 {strides = array<i32>} : memref<8x64xf32, #tpu.memory_space<vmem>>, vector<8x64xf32>,
    return
  }
  func.func @transform_0(%arg0: i32) -> (i32, i32) {
    %c0_i32 = arith.constant 0 : i32
    %c0_i32_0 = arith.constant 0 : i32
    return %arg0, %c0_i32 : i32, i32
  }
  func.func @transform_1(%arg0: i32) -> (i32, i32, i32) {
    %c0_i32 = arith.constant 0 : i32
    %c0_i32_0 = arith.constant 0 : i32
    %c0_i32_1 = arith.constant 0 : i32
    %c0_i32_2 = arith.constant 0 : i32
    return %c0_i32, %c0_i32_0, %c0_i32_1 : i32, i32, i32
  }
  func.func @transform_2(%arg0: i32) -> (i32, i32, i32) {
    %c0_i32 = arith.constant 0 : i32
    %c0_i32_0 = arith.constant 0 : i32
    %c0_i32_1 = arith.constant 0 : i32
    %c0_i32_2 = arith.constant 0 : i32
    return %c0_i32, %c0_i32_0, %c0_i32_1 : i32, i32, i32
  }
  func.func @transform_3(%arg0: i32) -> (i32, i32) {
    %c0_i32 = arith.constant 0 : i32
    %c0_i32_0 = arith.constant 0 : i32
    %c0_i32_1 = arith.constant 0 : i32
    return %c0_i32, %c0_i32_0 : i32, i32
  }
  func.func @transform_4(%arg0: i32) -> (i32, i32) {
    %c0_i32 = arith.constant 0 : i32
    %c0_i32_0 = arith.constant 0 : i32
    return %arg0, %c0_i32 : i32, i32
  }
}

</mosaic_0001>

<llo_original>
// kernel: tpu_custom_call.1
$region0: #{tpu_custom_call.1}
  #allocation0 [shape = 'u32[]', space=smem, size = 0x4, offset = 0x4, fixed_abs, tag = 'smem constant byte address 0x4 - core index']
  #allocation1 [shape = 'u32[144,128]{1,0:T(1,128)}', space=vmem, size = 0x12000, scoped, tag = 'internal scratch']
  #allocation2 [shape = 'f32[1,1]{1,0:T(1,128)S(6)}', space=smem, size = 0x200, scoped, tag = 'scoped memory for tpu_custom_call.1']
  %s0 = inlined_call_operand.hbm [shape: f32[8,64], index: 0, kind: input, shape index: {}]
  %s1 = inlined_call_operand.hbm [shape: f32[6,64,64], index: 1, kind: input, shape index: {}]
  %s2 = inlined_call_operand.vmem [shape: f32[6,1,64], index: 2, kind: input, shape index: {}]
  %s3 = inlined_call_operand.<no memory space> [shape: f32[1,1], index: 3, kind: input, shape index: {}]
  %s4 = inlined_call_operand.hbm [shape: f32[8,64], index: 4, kind: output, shape index: {}]
  %s5 = sld [smem:[#allocation0]]
  $region34: #{tpu_custom_call.1} parent=0
    _
  %s7 = ssub.s32 1, %s5
  %s8 = scalar_select 0, %s7, %s5
  %9 = sst [smem:[#allocation2]] %s3
  $region1: #{tpu_custom_call.1} parent=0
    #allocation3 [shape = 'u8[4096]{0}', space=vmem, size = 0x1000, scoped, tag = 'input window, operand 0, single buffered']
    #allocation4 [shape = 's32[1]{0}', space=sflag, size = 0x4, scoped, tag = 'scoped memory for tpu_custom_call.1']
    #allocation5 [shape = 's32[1]{0}', space=sflag, size = 0x4, scoped, tag = 'scoped memory for tpu_custom_call.1']
    #allocation6 [shape = 'u8[196608]{0}', space=vmem, size = 0x30000, scoped, tag = 'input window, operand 1, single buffered']
    #allocation7 [shape = 's32[1]{0}', space=sflag, size = 0x4, scoped, tag = 'scoped memory for tpu_custom_call.1']
    #allocation8 [shape = 'u8[4096]{0}', space=vmem, size = 0x1000, scoped, tag = 'output window, operand 0, single buffered']
    %10 = vsyncpa [#allocation4], 0
    %11 = vsyncpa [#allocation7], 0
    %12 = vsyncpa [#allocation5], 0
    // Predicated region
    $region2: #{tpu_custom_call.1} parent=1 // pred_check
      _
    $region3: #{tpu_custom_call.1} parent=1 // pred_check_branch
      %14 = sbr.rel (0) target = $region5
    $region4: #{tpu_custom_call.1} parent=1 // pred_region
      %s16 = ssub.s32 128, 128
      %17 = vsyncadd [#allocation4], %s16
      %s19 = sshll.u32 [#allocation3], 4
      %s20 = int_to_ptr.vmem [resolvable:$true] %s19
      %22 = dma.hbm_to_vmem [thread:$0]  %s0, 128, %s20, [#allocation4]
    $region5: #{tpu_custom_call.1} parent=1 // pred_fallthru
      _
    // Predicated region
    $region6: #{tpu_custom_call.1} parent=1 // pred_check
      _
    $region7: #{tpu_custom_call.1} parent=1 // pred_check_branch
      %24 = sbr.rel (0) target = $region9
    $region8: #{tpu_custom_call.1} parent=1 // pred_region
      %s26 = ssub.s32 6144, 6144
      %27 = vsyncadd [#allocation7], %s26
      %s28 = sshll.u32 [#allocation6], 4
      %s29 = int_to_ptr.vmem [resolvable:$true] %s28
      %34 = dma.hbm_to_vmem [thread:$0]  %s1, 6144, %s29, [#allocation7], 128, 128, 8
    $region9: #{tpu_custom_call.1} parent=1 // pred_fallthru
      _
    // Predicated region
    $region10: #{tpu_custom_call.1} parent=1 // pred_check
      _
    $region11: #{tpu_custom_call.1} parent=1 // pred_check_branch
      %36 = sbr.rel (0) target = $region13
    $region12: #{tpu_custom_call.1} parent=1 // pred_region
      _
    $region13: #{tpu_custom_call.1} parent=1 // pred_fallthru
      _
    // Predicated region
    $region14: #{tpu_custom_call.1} parent=1 // pred_check
      _
    $region15: #{tpu_custom_call.1} parent=1 // pred_check_branch
      %38 = sbr.rel (0) target = $region17
    $region16: #{tpu_custom_call.1} parent=1 // pred_region
      _
    $region17: #{tpu_custom_call.1} parent=1 // pred_fallthru
      _
    // Predicated region
    $region18: #{tpu_custom_call.1} parent=1 // pred_check
      _
    $region19: #{tpu_custom_call.1} parent=1 // pred_check_branch
      %40 = sbr.rel (0) target = $region21
    $region20: #{tpu_custom_call.1} parent=1 // pred_region
      %41 = dma.done [#allocation4], 128
    $region21: #{tpu_custom_call.1} parent=1 // pred_fallthru
      _
    // Predicated region
    $region22: #{tpu_custom_call.1} parent=1 // pred_check
      _
    $region23: #{tpu_custom_call.1} parent=1 // pred_check_branch
      %43 = sbr.rel (0) target = $region25
    $region24: #{tpu_custom_call.1} parent=1 // pred_region
      %44 = dma.done [#allocation7], 6144
    $region25: #{tpu_custom_call.1} parent=1 // pred_fallthru
      _
    %v45 = vld [vmem:[#allocation3] sm:$0xff]
    %v46 = vld [vmem:[#allocation6] sm:$0xff]
    %v47 = vld [vmem:[#allocation6 + $0x8] sm:$0xff]
    %v48 = vld [vmem:[#allocation6 + $0x10] sm:$0xff]
    %v49 = vld [vmem:[#allocation6 + $0x18] sm:$0xff]
    %v50 = vld [vmem:[#allocation6 + $0x20] sm:$0xff]
    %v51 = vld [vmem:[#allocation6 + $0x28] sm:$0xff]
    %v52 = vld [vmem:[#allocation6 + $0x30] sm:$0xff]
    %v53 = vld [vmem:[#allocation6 + $0x38] sm:$0xff]
    %v54 = vld [vmem:[%s2] sm:$0x1]
    %v56 = vlaneseq
    %v57 = vshrl.u32 %v56, 7
    %v58 = vsub.s32 0, %v57
    %v59 = vrot.slane %v54, %v58
    %vm61 = vcmask 523264
    %v63 = vsel %vm61, %v45, 0
    %65 = vmatprep.subr.mxu0 0.0
    %v66 = vand.u32 %v46, 4294901760
    %67 = vmatpush1.msra.mxu0 %v66
    %68 = vmatprep.subr.mxu0 0.0
    %v69 = vand.u32 %v47, 4294901760
    %70 = vmatpush1.msra.mxu0 %v69
    %71 = vmatprep.subr.mxu0 0.0
    %v72 = vand.u32 %v48, 4294901760
    %73 = vmatpush1.msra.mxu0 %v72
    %74 = vmatprep.subr.mxu0 0.0
    %v75 = vand.u32 %v49, 4294901760
    %76 = vmatpush1.msra.mxu0 %v75
    %77 = vmatprep.subr.mxu0 0.0
    %v78 = vand.u32 %v50, 4294901760
    %79 = vmatpush1.msra.mxu0 %v78
    %80 = vmatprep.subr.mxu0 0.0
    %v81 = vand.u32 %v51, 4294901760
    %82 = vmatpush1.msra.mxu0 %v81
    %83 = vmatprep.subr.mxu0 0.0
    %v84 = vand.u32 %v52, 4294901760
    %85 = vmatpush1.msra.mxu0 %v84
    %86 = vmatprep.subr.mxu0 0.0
    %v87 = vand.u32 %v53, 4294901760
    %88 = vmatpush1.msra.mxu0 %v87
    %89 = vmatprep.subr.mxu0 0.0
    %90 = vmatpush1.msra.mxu0 0.0
    %91 = vmatprep.subr.mxu0 0.0
    %92 = vmatpush1.msra.mxu0 0.0
    %93 = vmatprep.subr.mxu0 0.0
    %94 = vmatpush1.msra.mxu0 0.0
    %95 = vmatprep.subr.mxu0 0.0
    %96 = vmatpush1.msra.mxu0 0.0
    %97 = vmatprep.subr.mxu0 0.0
    %98 = vmatpush1.msra.mxu0 0.0
    %99 = vmatprep.subr.mxu0 0.0
    %100 = vmatpush1.msra.mxu0 0.0
    %101 = vmatprep.subr.mxu0 0.0
    %102 = vmatpush1.msra.mxu0 0.0
    %103 = vmatprep.subr.mxu0 0.0
    %104 = vmatpush1.msra.mxu0 0.0
    %105 = vmatprep.subr.mxu0 0.0
    %106 = vmatpush1.msra.mxu0 0.0
    %107 = vmatprep.subr.mxu0 0.0
    %108 = vmatpush1.msra.mxu0 0.0
    %109 = vmatprep.subr.mxu0 0.0
    %110 = vmatpush1.msra.mxu0 0.0
    %111 = vmatprep.subr.mxu0 0.0
    %112 = vmatpush1.msra.mxu0 0.0
    %113 = vmatprep.subr.mxu0 0.0
    %114 = vmatpush1.msra.mxu0 0.0
    %115 = vmatprep.subr.mxu0 0.0
    %116 = vmatpush1.msra.mxu0 0.0
    %117 = vmatprep.subr.mxu0 0.0
    %118 = vmatpush1.msra.mxu0 0.0
    %119 = vmatprep.subr.mxu0 0.0
    %120 = vmatpush1.msra.mxu0 0.0
    %121 = vmatprep.subr.mxu0 0.0
    %122 = vmatpush1.msra.mxu0 0.0
    %123 = vmatprep.subr.mxu0 0.0
    %124 = vmatpush1.msra.mxu0 0.0
    %125 = vmatprep.subr.mxu0 0.0
    %126 = vmatpush1.msra.mxu0 0.0
    %127 = vmatprep.subr.mxu0 0.0
    %128 = vmatpush1.msra.mxu0 0.0
    %129 = vmatprep.subr.mxu0 0.0
    %130 = vmatpush1.msra.mxu0 0.0
    %131 = vmatprep.subr.mxu0 0.0
    %132 = vmatpush1.msra.mxu0 0.0
    %133 = vmatprep.subr.mxu0 0.0
    %134 = vmatpush1.msra.mxu0 0.0
    %135 = vmatprep.subr.mxu0 0.0
    %136 = vmatpush1.msra.mxu0 0.0
    %137 = vmatprep.mubr.f32.mxu0 0.0
    %v138 = vand.u32 %v63, 4294901760
    %v139 = vsub.f32 %v63, %v138
    %v140 = vand.u32 %v139, 4294901760
    %v141 = vsub.f32 %v139, %v140
    %v142 = vand.u32 %v141, 4294901760
    %143 = vmatmul.mubr.f32.gmra.mrb[0].mxu0 %v142
    %v144 = vpop.f32.mrb[0].mxu0
    %v145 = vadd.f32 %v59, %v144
    %v146 = vpop.f32.mrb[0].mxu0
    %147 = vdwg.mxu0
    %148 = vmatprep.subr.mxu0 0.0
    %v149 = vand.u32 %v46, 4294901760
    %v150 = vsub.f32 %v46, %v149
    %v151 = vand.u32 %v150, 4294901760
    %v152 = vsub.f32 %v150, %v151
    %v153 = vand.u32 %v152, 4294901760
    %154 = vmatpush1.msra.mxu0 %v153
    %155 = vmatprep.subr.mxu0 0.0
    %v156 = vand.u32 %v47, 4294901760
    %v157 = vsub.f32 %v47, %v156
    %v158 = vand.u32 %v157, 4294901760
    %v159 = vsub.f32 %v157, %v158
    %v160 = vand.u32 %v159, 4294901760
    %161 = vmatpush1.msra.mxu0 %v160
    %162 = vmatprep.subr.mxu0 0.0
    %v163 = vand.u32 %v48, 4294901760
    %v164 = vsub.f32 %v48, %v163
    %v165 = vand.u32 %v164, 4294901760
    %v166 = vsub.f32 %v164, %v165
    %v167 = vand.u32 %v166, 4294901760
    %168 = vmatpush1.msra.mxu0 %v167
    %169 = vmatprep.subr.mxu0 0.0
    %v170 = vand.u32 %v49, 4294901760
    %v171 = vsub.f32 %v49, %v170
    %v172 = vand.u32 %v171, 4294901760
    %v173 = vsub.f32 %v171, %v172
    %v174 = vand.u32 %v173, 4294901760
    %175 = vmatpush1.msra.mxu0 %v174
    %176 = vmatprep.subr.mxu0 0.0
    %v177 = vand.u32 %v50, 4294901760
    %v178 = vsub.f32 %v50, %v177
    %v179 = vand.u32 %v178, 4294901760
    %v180 = vsub.f32 %v178, %v179
    %v181 = vand.u32 %v180, 4294901760
    %182 = vmatpush1.msra.mxu0 %v181
    %183 = vmatprep.subr.mxu0 0.0
    %v184 = vand.u32 %v51, 4294901760
    %v185 = vsub.f32 %v51, %v184
    %v186 = vand.u32 %v185, 4294901760
    %v187 = vsub.f32 %v185, %v186
    %v188 = vand.u32 %v187, 4294901760
    %189 = vmatpush1.msra.mxu0 %v188
    %190 = vmatprep.subr.mxu0 0.0
    %v191 = vand.u32 %v52, 4294901760
    %v192 = vsub.f32 %v52, %v191
    %v193 = vand.u32 %v192, 4294901760
    %v194 = vsub.f32 %v192, %v193
    %v195 = vand.u32 %v194, 4294901760
    %196 = vmatpush1.msra.mxu0 %v195
    %197 = vmatprep.subr.mxu0 0.0
    %v198 = vand.u32 %v53, 4294901760
    %v199 = vsub.f32 %v53, %v198
    %v200 = vand.u32 %v199, 4294901760
    %v201 = vsub.f32 %v199, %v200
    %v202 = vand.u32 %v201, 4294901760
    %203 = vmatpush1.msra.mxu0 %v202
    %204 = vmatprep.subr.mxu0 0.0
    %205 = vmatpush1.msra.mxu0 0.0
    %206 = vmatprep.subr.mxu0 0.0
    %207 = vmatpush1.msra.mxu0 0.0
    %208 = vmatprep.subr.mxu0 0.0
    %209 = vmatpush1.msra.mxu0 0.0
    %210 = vmatprep.subr.mxu0 0.0
    %211 = vmatpush1.msra.mxu0 0.0
    %212 = vmatprep.subr.mxu0 0.0
    %213 = vmatpush1.msra.mxu0 0.0
    %214 = vmatprep.subr.mxu0 0.0
    %215 = vmatpush1.msra.mxu0 0.0
    %216 = vmatprep.subr.mxu0 0.0
    %217 = vmatpush1.msra.mxu0 0.0
    %218 = vmatprep.subr.mxu0 0.0
    %219 = vmatpush1.msra.mxu0 0.0
    %220 = vmatprep.subr.mxu0 0.0
    %221 = vmatpush1.msra.mxu0 0.0
    %222 = vmatprep.subr.mxu0 0.0
    %223 = vmatpush1.msra.mxu0 0.0
    %224 = vmatprep.subr.mxu0 0.0
    %225 = vmatpush1.msra.mxu0 0.0
    %226 = vmatprep.subr.mxu0 0.0
    %227 = vmatpush1.msra.mxu0 0.0
    %228 = vmatprep.subr.mxu0 0.0
    %229 = vmatpush1.msra.mxu0 0.0
    %230 = vmatprep.subr.mxu0 0.0
    %231 = vmatpush1.msra.mxu0 0.0
    %232 = vmatprep.subr.mxu0 0.0
    %233 = vmatpush1.msra.mxu0 0.0
    %234 = vmatprep.subr.mxu0 0.0
    %235 = vmatpush1.msra.mxu0 0.0
    %236 = vmatprep.subr.mxu0 0.0
    %237 = vmatpush1.msra.mxu0 0.0
    %238 = vmatprep.subr.mxu0 0.0
    %239 = vmatpush1.msra.mxu0 0.0
    %240 = vmatprep.subr.mxu0 0.0
    %241 = vmatpush1.msra.mxu0 0.0
    %242 = vmatprep.subr.mxu0 0.0
    %243 = vmatpush1.msra.mxu0 0.0
    %244 = vmatprep.subr.mxu0 0.0
    %245 = vmatpush1.msra.mxu0 0.0
    %246 = vmatprep.subr.mxu0 0.0
    %247 = vmatpush1.msra.mxu0 0.0
    %248 = vmatprep.subr.mxu0 0.0
    %249 = vmatpush1.msra.mxu0 0.0
    %250 = vmatprep.subr.mxu0 0.0
    %251 = vmatpush1.msra.mxu0 0.0
    %252 = vmatprep.mubr.f32.mxu0 0.0
    %v253 = vand.u32 %v63, 4294901760
    %254 = vmatmul.mubr.f32.gmra.mrb[0].mxu0 %v253
    %v255 = vpop.f32.mrb[0].mxu0
    %v256 = vadd.f32 %v145, %v255
    %v257 = vpop.f32.mrb[0].mxu0
    %258 = vdwg.mxu0
    %259 = vmatprep.subr.mxu0 0.0
    %v260 = vand.u32 %v46, 4294901760
    %v261 = vsub.f32 %v46, %v260
    %262 = vmatpush1.msra.mxu0 %v261
    %263 = vmatprep.subr.mxu0 0.0
    %v264 = vand.u32 %v47, 4294901760
    %v265 = vsub.f32 %v47, %v264
    %266 = vmatpush1.msra.mxu0 %v265
    %267 = vmatprep.subr.mxu0 0.0
    %v268 = vand.u32 %v48, 4294901760
    %v269 = vsub.f32 %v48, %v268
    %270 = vmatpush1.msra.mxu0 %v269
    %271 = vmatprep.subr.mxu0 0.0
    %v272 = vand.u32 %v49, 4294901760
    %v273 = vsub.f32 %v49, %v272
    %274 = vmatpush1.msra.mxu0 %v273
    %275 = vmatprep.subr.mxu0 0.0
    %v276 = vand.u32 %v50, 4294901760
    %v277 = vsub.f32 %v50, %v276
    %278 = vmatpush1.msra.mxu0 %v277
    %279 = vmatprep.subr.mxu0 0.0
    %v280 = vand.u32 %v51, 4294901760
    %v281 = vsub.f32 %v51, %v280
    %282 = vmatpush1.msra.mxu0 %v281
    %283 = vmatprep.subr.mxu0 0.0
    %v284 = vand.u32 %v52, 4294901760
    %v285 = vsub.f32 %v52, %v284
    %286 = vmatpush1.msra.mxu0 %v285
    %287 = vmatprep.subr.mxu0 0.0
    %v288 = vand.u32 %v53, 4294901760
    %v289 = vsub.f32 %v53, %v288
    %290 = vmatpush1.msra.mxu0 %v289
    %291 = vmatprep.subr.mxu0 0.0
    %292 = vmatpush1.msra.mxu0 0.0
    %293 = vmatprep.subr.mxu0 0.0
    %294 = vmatpush1.msra.mxu0 0.0
    %295 = vmatprep.subr.mxu0 0.0
    %296 = vmatpush1.msra.mxu0 0.0
    %297 = vmatprep.subr.mxu0 0.0
    %298 = vmatpush1.msra.mxu0 0.0
    %299 = vmatprep.subr.mxu0 0.0
    %300 = vmatpush1.msra.mxu0 0.0
    %301 = vmatprep.subr.mxu0 0.0
    %302 = vmatpush1.msra.mxu0 0.0
    %303 = vmatprep.subr.mxu0 0.0
    %304 = vmatpush1.msra.mxu0 0.0
    %305 = vmatprep.subr.mxu0 0.0
    %306 = vmatpush1.msra.mxu0 0.0
    %307 = vmatprep.subr.mxu0 0.0
    %308 = vmatpush1.msra.mxu0 0.0
    %309 = vmatprep.subr.mxu0 0.0
    %310 = vmatpush1.msra.mxu0 0.0
    %311 = vmatprep.subr.mxu0 0.0
    %312 = vmatpush1.msra.mxu0 0.0
    %313 = vmatprep.subr.mxu0 0.0
    %314 = vmatpush1.msra.mxu0 0.0
    %315 = vmatprep.subr.mxu0 0.0
    %316 = vmatpush1.msra.mxu0 0.0
    %317 = vmatprep.subr.mxu0 0.0
    %318 = vmatpush1.msra.mxu0 0.0
    %319 = vmatprep.subr.mxu0 0.0
    %320 = vmatpush1.msra.mxu0 0.0
    %321 = vmatprep.subr.mxu0 0.0
    %322 = vmatpush1.msra.mxu0 0.0
    %323 = vmatprep.subr.mxu0 0.0
    %324 = vmatpush1.msra.mxu0 0.0
    %325 = vmatprep.subr.mxu0 0.0
    %326 = vmatpush1.msra.mxu0 0.0
    %327 = vmatprep.subr.mxu0 0.0
    %328 = vmatpush1.msra.mxu0 0.0
    %329 = vmatprep.subr.mxu0 0.0
    %330 = vmatpush1.msra.mxu0 0.0
    %331 = vmatprep.subr.mxu0 0.0
    %332 = vmatpush1.msra.mxu0 0.0
    %333 = vmatprep.subr.mxu0 0.0
    %334 = vmatpush1.msra.mxu0 0.0
    %335 = vmatprep.subr.mxu0 0.0
    %336 = vmatpush1.msra.mxu0 0.0
    %337 = vmatprep.subr.mxu0 0.0
    %338 = vmatpush1.msra.mxu0 0.0
    %339 = vmatprep.mubr.f32.mxu0 0.0
    %v340 = vand.u32 %v63, 4294901760
    %v341 = vsub.f32 %v63, %v340
    %342 = vmatmul.mubr.f32.gmra.mrb[0].mxu0 %v341
    %v343 = vpop.f32.mrb[0].mxu0
    %v344 = vadd.f32 %v256, %v343
    %v345 = vpop.f32.mrb[0].mxu0
    %346 = vdwg.mxu0
    %347 = vmatprep.subr.mxu0 0.0
    %v348 = vand.u32 %v46, 4294901760
    %349 = vmatpush1.msra.mxu0 %v348
    %350 = vmatprep.subr.mxu0 0.0
    %v351 = vand.u32 %v47, 4294901760
    %352 = vmatpush1.msra.mxu0 %v351
    %353 = vmatprep.subr.mxu0 0.0
    %v354 = vand.u32 %v48, 4294901760
    %355 = vmatpush1.msra.mxu0 %v354
    %356 = vmatprep.subr.mxu0 0.0
    %v357 = vand.u32 %v49, 4294901760
    %358 = vmatpush1.msra.mxu0 %v357
    %359 = vmatprep.subr.mxu0 0.0
    %v360 = vand.u32 %v50, 4294901760
    %361 = vmatpush1.msra.mxu0 %v360
    %362 = vmatprep.subr.mxu0 0.0
    %v363 = vand.u32 %v51, 4294901760
    %364 = vmatpush1.msra.mxu0 %v363
    %365 = vmatprep.subr.mxu0 0.0
    %v366 = vand.u32 %v52, 4294901760
    %367 = vmatpush1.msra.mxu0 %v366
    %368 = vmatprep.subr.mxu0 0.0
    %v369 = vand.u32 %v53, 4294901760
    %370 = vmatpush1.msra.mxu0 %v369
    %371 = vmatprep.subr.mxu0 0.0
    %372 = vmatpush1.msra.mxu0 0.0
    %373 = vmatprep.subr.mxu0 0.0
    %374 = vmatpush1.msra.mxu0 0.0
    %375 = vmatprep.subr.mxu0 0.0
    %376 = vmatpush1.msra.mxu0 0.0
    %377 = vmatprep.subr.mxu0 0.0
    %378 = vmatpush1.msra.mxu0 0.0
    %379 = vmatprep.subr.mxu0 0.0
    %380 = vmatpush1.msra.mxu0 0.0
    %381 = vmatprep.subr.mxu0 0.0
    %382 = vmatpush1.msra.mxu0 0.0
    %383 = vmatprep.subr.mxu0 0.0
    %384 = vmatpush1.msra.mxu0 0.0
    %385 = vmatprep.subr.mxu0 0.0
    %386 = vmatpush1.msra.mxu0 0.0
    %387 = vmatprep.subr.mxu0 0.0
    %388 = vmatpush1.msra.mxu0 0.0
    %389 = vmatprep.subr.mxu0 0.0
    %390 = vmatpush1.msra.mxu0 0.0
    %391 = vmatprep.subr.mxu0 0.0
    %392 = vmatpush1.msra.mxu0 0.0
    %393 = vmatprep.subr.mxu0 0.0
    %394 = vmatpush1.msra.mxu0 0.0
    %395 = vmatprep.subr.mxu0 0.0
    %396 = vmatpush1.msra.mxu0 0.0
    %397 = vmatprep.subr.mxu0 0.0
    %398 = vmatpush1.msra.mxu0 0.0
    %399 = vmatprep.subr.mxu0 0.0
    %400 = vmatpush1.msra.mxu0 0.0
    %401 = vmatprep.subr.mxu0 0.0
    %402 = vmatpush1.msra.mxu0 0.0
    %403 = vmatprep.subr.mxu0 0.0
    %404 = vmatpush1.msra.mxu0 0.0
    %405 = vmatprep.subr.mxu0 0.0
    %406 = vmatpush1.msra.mxu0 0.0
    %407 = vmatprep.subr.mxu0 0.0
    %408 = vmatpush1.msra.mxu0 0.0
    %409 = vmatprep.subr.mxu0 0.0
    %410 = vmatpush1.msra.mxu0 0.0
    %411 = vmatprep.subr.mxu0 0.0
    %412 = vmatpush1.msra.mxu0 0.0
    %413 = vmatprep.subr.mxu0 0.0
    %414 = vmatpush1.msra.mxu0 0.0
    %415 = vmatprep.subr.mxu0 0.0
    %416 = vmatpush1.msra.mxu0 0.0
    %417 = vmatprep.subr.mxu0 0.0
    %418 = vmatpush1.msra.mxu0 0.0
    %419 = vmatprep.mubr.f32.mxu0 0.0
    %v420 = vand.u32 %v63, 4294901760
    %v421 = vsub.f32 %v63, %v420
    %v422 = vand.u32 %v421, 4294901760
    %423 = vmatmul.mubr.f32.gmra.mrb[0].mxu0 %v422
    %v424 = vpop.f32.mrb[0].mxu0
    %v425 = vadd.f32 %v344, %v424
    %v426 = vpop.f32.mrb[0].mxu0
    %427 = vdwg.mxu0
    %428 = vmatprep.subr.mxu0 0.0
    %v429 = vand.u32 %v46, 4294901760
    %v430 = vsub.f32 %v46, %v429
    %v431 = vand.u32 %v430, 4294901760
    %432 = vmatpush1.msra.mxu0 %v431
    %433 = vmatprep.subr.mxu0 0.0
    %v434 = vand.u32 %v47, 4294901760
    %v435 = vsub.f32 %v47, %v434
    %v436 = vand.u32 %v435, 4294901760
    %437 = vmatpush1.msra.mxu0 %v436
    %438 = vmatprep.subr.mxu0 0.0
    %v439 = vand.u32 %v48, 4294901760
    %v440 = vsub.f32 %v48, %v439
    %v441 = vand.u32 %v440, 4294901760
    %442 = vmatpush1.msra.mxu0 %v441
    %443 = vmatprep.subr.mxu0 0.0
    %v444 = vand.u32 %v49, 4294901760
    %v445 = vsub.f32 %v49, %v444
    %v446 = vand.u32 %v445, 4294901760
    %447 = vmatpush1.msra.mxu0 %v446
    %448 = vmatprep.subr.mxu0 0.0
    %v449 = vand.u32 %v50, 4294901760
    %v450 = vsub.f32 %v50, %v449
    %v451 = vand.u32 %v450, 4294901760
    %452 = vmatpush1.msra.mxu0 %v451
    %453 = vmatprep.subr.mxu0 0.0
    %v454 = vand.u32 %v51, 4294901760
    %v455 = vsub.f32 %v51, %v454
    %v456 = vand.u32 %v455, 4294901760
    %457 = vmatpush1.msra.mxu0 %v456
    %458 = vmatprep.subr.mxu0 0.0
    %v459 = vand.u32 %v52, 4294901760
    %v460 = vsub.f32 %v52, %v459
    %v461 = vand.u32 %v460, 4294901760
    %462 = vmatpush1.msra.mxu0 %v461
    %463 = vmatprep.subr.mxu0 0.0
    %v464 = vand.u32 %v53, 4294901760
    %v465 = vsub.f32 %v53, %v464
    %v466 = vand.u32 %v465, 4294901760
    %467 = vmatpush1.msra.mxu0 %v466
    %468 = vmatprep.subr.mxu0 0.0
    %469 = vmatpush1.msra.mxu0 0.0
    %470 = vmatprep.subr.mxu0 0.0
    %471 = vmatpush1.msra.mxu0 0.0
    %472 = vmatprep.subr.mxu0 0.0
    %473 = vmatpush1.msra.mxu0 0.0
    %474 = vmatprep.subr.mxu0 0.0
    %475 = vmatpush1.msra.mxu0 0.0
    %476 = vmatprep.subr.mxu0 0.0
    %477 = vmatpush1.msra.mxu0 0.0
    %478 = vmatprep.subr.mxu0 0.0
    %479 = vmatpush1.msra.mxu0 0.0
    %480 = vmatprep.subr.mxu0 0.0
    %481 = vmatpush1.msra.mxu0 0.0
    %482 = vmatprep.subr.mxu0 0.0
    %483 = vmatpush1.msra.mxu0 0.0
    %484 = vmatprep.subr.mxu0 0.0
    %485 = vmatpush1.msra.mxu0 0.0
    %486 = vmatprep.subr.mxu0 0.0
    %487 = vmatpush1.msra.mxu0 0.0
    %488 = vmatprep.subr.mxu0 0.0
    %489 = vmatpush1.msra.mxu0 0.0
    %490 = vmatprep.subr.mxu0 0.0
    %491 = vmatpush1.msra.mxu0 0.0
    %492 = vmatprep.subr.mxu0 0.0
    %493 = vmatpush1.msra.mxu0 0.0
    %494 = vmatprep.subr.mxu0 0.0
    %495 = vmatpush1.msra.mxu0 0.0
    %496 = vmatprep.subr.mxu0 0.0
    %497 = vmatpush1.msra.mxu0 0.0
    %498 = vmatprep.subr.mxu0 0.0
    %499 = vmatpush1.msra.mxu0 0.0
    %500 = vmatprep.subr.mxu0 0.0
    %501 = vmatpush1.msra.mxu0 0.0
    %502 = vmatprep.subr.mxu0 0.0
    %503 = vmatpush1.msra.mxu0 0.0
    %504 = vmatprep.subr.mxu0 0.0
    %505 = vmatpush1.msra.mxu0 0.0
    %506 = vmatprep.subr.mxu0 0.0
    %507 = vmatpush1.msra.mxu0 0.0
    %508 = vmatprep.subr.mxu0 0.0
    %509 = vmatpush1.msra.mxu0 0.0
    %510 = vmatprep.subr.mxu0 0.0
    %511 = vmatpush1.msra.mxu0 0.0
    %512 = vmatprep.subr.mxu0 0.0
    %513 = vmatpush1.msra.mxu0 0.0
    %514 = vmatprep.subr.mxu0 0.0
    %515 = vmatpush1.msra.mxu0 0.0
    %516 = vmatprep.mubr.f32.mxu0 0.0
    %v517 = vand.u32 %v63, 4294901760
    %518 = vmatmul.mubr.f32.gmra.mrb[0].mxu0 %v517
    %v519 = vpop.f32.mrb[0].mxu0
    %v520 = vadd.f32 %v425, %v519
    %v521 = vpop.f32.mrb[0].mxu0
    %522 = vdwg.mxu0
    %523 = vmatprep.subr.mxu0 0.0
    %v524 = vand.u32 %v46, 4294901760
    %525 = vmatpush1.msra.mxu0 %v524
    %526 = vmatprep.subr.mxu0 0.0
    %v527 = vand.u32 %v47, 4294901760
    %528 = vmatpush1.msra.mxu0 %v527
    %529 = vmatprep.subr.mxu0 0.0
    %v530 = vand.u32 %v48, 4294901760
    %531 = vmatpush1.msra.mxu0 %v530
    %532 = vmatprep.subr.mxu0 0.0
    %v533 = vand.u32 %v49, 4294901760
    %534 = vmatpush1.msra.mxu0 %v533
    %535 = vmatprep.subr.mxu0 0.0
    %v536 = vand.u32 %v50, 4294901760
    %537 = vmatpush1.msra.mxu0 %v536
    %538 = vmatprep.subr.mxu0 0.0
    %v539 = vand.u32 %v51, 4294901760
    %540 = vmatpush1.msra.mxu0 %v539
    %541 = vmatprep.subr.mxu0 0.0
    %v542 = vand.u32 %v52, 4294901760
    %543 = vmatpush1.msra.mxu0 %v542
    %544 = vmatprep.subr.mxu0 0.0
    %v545 = vand.u32 %v53, 4294901760
    %546 = vmatpush1.msra.mxu0 %v545
    %547 = vmatprep.subr.mxu0 0.0
    %548 = vmatpush1.msra.mxu0 0.0
    %549 = vmatprep.subr.mxu0 0.0
    %550 = vmatpush1.msra.mxu0 0.0
    %551 = vmatprep.subr.mxu0 0.0
    %552 = vmatpush1.msra.mxu0 0.0
    %553 = vmatprep.subr.mxu0 0.0
    %554 = vmatpush1.msra.mxu0 0.0
    %555 = vmatprep.subr.mxu0 0.0
    %556 = vmatpush1.msra.mxu0 0.0
    %557 = vmatprep.subr.mxu0 0.0
    %558 = vmatpush1.msra.mxu0 0.0
    %559 = vmatprep.subr.mxu0 0.0
    %560 = vmatpush1.msra.mxu0 0.0
    %561 = vmatprep.subr.mxu0 0.0
    %562 = vmatpush1.msra.mxu0 0.0
    %563 = vmatprep.subr.mxu0 0.0
    %564 = vmatpush1.msra.mxu0 0.0
    %565 = vmatprep.subr.mxu0 0.0
    %566 = vmatpush1.msra.mxu0 0.0
    %567 = vmatprep.subr.mxu0 0.0
    %568 = vmatpush1.msra.mxu0 0.0
    %569 = vmatprep.subr.mxu0 0.0
    %570 = vmatpush1.msra.mxu0 0.0
    %571 = vmatprep.subr.mxu0 0.0
    %572 = vmatpush1.msra.mxu0 0.0
    %573 = vmatprep.subr.mxu0 0.0
    %574 = vmatpush1.msra.mxu0 0.0
    %575 = vmatprep.subr.mxu0 0.0
    %576 = vmatpush1.msra.mxu0 0.0
    %577 = vmatprep.subr.mxu0 0.0
    %578 = vmatpush1.msra.mxu0 0.0
    %579 = vmatprep.subr.mxu0 0.0
    %580 = vmatpush1.msra.mxu0 0.0
    %581 = vmatprep.subr.mxu0 0.0
    %582 = vmatpush1.msra.mxu0 0.0
    %583 = vmatprep.subr.mxu0 0.0
    %584 = vmatpush1.msra.mxu0 0.0
    %585 = vmatprep.subr.mxu0 0.0
    %586 = vmatpush1.msra.mxu0 0.0
    %587 = vmatprep.subr.mxu0 0.0
    %588 = vmatpush1.msra.mxu0 0.0
    %589 = vmatprep.subr.mxu0 0.0
    %590 = vmatpush1.msra.mxu0 0.0
    %591 = vmatprep.subr.mxu0 0.0
    %592 = vmatpush1.msra.mxu0 0.0
    %593 = vmatprep.subr.mxu0 0.0
    %594 = vmatpush1.msra.mxu0 0.0
    %595 = vmatprep.mubr.f32.mxu0 0.0
    %v596 = vand.u32 %v63, 4294901760
    %597 = vmatmul.mubr.f32.gmra.mrb[0].mxu0 %v596
    %v598 = vpop.f32.mrb[0].mxu0
    %v599 = vadd.f32 %v520, %v598
    %v600 = vpop.f32.mrb[0].mxu0
    %601 = vdwg.mxu0
    %v602 = vmax.f32 %v599, 0.0
    %s603 = scalar_lea.vmem [#allocation6], 64
    %v604 = vld [vmem:[%s603] sm:$0xff]
    %v605 = vld [vmem:[%s603 + $0x8] sm:$0xff]
    %v606 = vld [vmem:[%s603 + $0x10] sm:$0xff]
    %v607 = vld [vmem:[%s603 + $0x18] sm:$0xff]
    %s608 = scalar_lea.vmem %s2, 1
    %v609 = vld [vmem:[%s608] sm:$0x1]
    %v611 = vlaneseq
    %v612 = vshrl.u32 %v611, 7
    %v613 = vsub.s32 0, %v612
    %v614 = vrot.slane %v609, %v613
    %vm616 = vcmask 261120
    %v618 = vsel %vm616, %v602, 0
    %620 = vmatprep.subr.mxu0 0.0
    %v621 = vand.u32 %v604, 4294901760
    %622 = vmatpush1.msra.mxu0 %v621
    %623 = vmatprep.subr.mxu0 0.0
    %v624 = vand.u32 %v605, 4294901760
    %625 = vmatpush1.msra.mxu0 %v624
    %626 = vmatprep.subr.mxu0 0.0
    %v627 = vand.u32 %v606, 4294901760
    %628 = vmatpush1.msra.mxu0 %v627
    %629 = vmatprep.subr.mxu0 0.0
    %v630 = vand.u32 %v607, 4294901760
    %631 = vmatpush1.msra.mxu0 %v630
    %632 = vmatprep.subr.mxu0 0.0
    %633 = vmatpush1.msra.mxu0 0.0
    %634 = vmatprep.subr.mxu0 0.0
    %635 = vmatpush1.msra.mxu0 0.0
    %636 = vmatprep.subr.mxu0 0.0
    %637 = vmatpush1.msra.mxu0 0.0
    %638 = vmatprep.subr.mxu0 0.0
    %639 = vmatpush1.msra.mxu0 0.0
    %640 = vmatprep.subr.mxu0 0.0
    %641 = vmatpush1.msra.mxu0 0.0
    %642 = vmatprep.subr.mxu0 0.0
    %643 = vmatpush1.msra.mxu0 0.0
    %644 = vmatprep.subr.mxu0 0.0
    %645 = vmatpush1.msra.mxu0 0.0
    %646 = vmatprep.subr.mxu0 0.0
    %647 = vmatpush1.msra.mxu0 0.0
    %648 = vmatprep.subr.mxu0 0.0
    %649 = vmatpush1.msra.mxu0 0.0
    %650 = vmatprep.subr.mxu0 0.0
    %651 = vmatpush1.msra.mxu0 0.0
    %652 = vmatprep.subr.mxu0 0.0
    %653 = vmatpush1.msra.mxu0 0.0
    %654 = vmatprep.subr.mxu0 0.0
    %655 = vmatpush1.msra.mxu0 0.0
    %656 = vmatprep.subr.mxu0 0.0
    %657 = vmatpush1.msra.mxu0 0.0
    %658 = vmatprep.subr.mxu0 0.0
    %659 = vmatpush1.msra.mxu0 0.0
    %660 = vmatprep.subr.mxu0 0.0
    %661 = vmatpush1.msra.mxu0 0.0
    %662 = vmatprep.subr.mxu0 0.0
    %663 = vmatpush1.msra.mxu0 0.0
    %664 = vmatprep.subr.mxu0 0.0
    %665 = vmatpush1.msra.mxu0 0.0
    %666 = vmatprep.subr.mxu0 0.0
    %667 = vmatpush1.msra.mxu0 0.0
    %668 = vmatprep.subr.mxu0 0.0
    %669 = vmatpush1.msra.mxu0 0.0
    %670 = vmatprep.subr.mxu0 0.0
    %671 = vmatpush1.msra.mxu0 0.0
    %672 = vmatprep.subr.mxu0 0.0
    %673 = vmatpush1.msra.mxu0 0.0
    %674 = vmatprep.subr.mxu0 0.0
    %675 = vmatpush1.msra.mxu0 0.0
    %676 = vmatprep.subr.mxu0 0.0
    %677 = vmatpush1.msra.mxu0 0.0
    %678 = vmatprep.subr.mxu0 0.0
    %679 = vmatpush1.msra.mxu0 0.0
    %680 = vmatprep.subr.mxu0 0.0
    %681 = vmatpush1.msra.mxu0 0.0
    %682 = vmatprep.subr.mxu0 0.0
    %683 = vmatpush1.msra.mxu0 0.0
    %684 = vmatprep.subr.mxu0 0.0
    %685 = vmatpush1.msra.mxu0 0.0
    %686 = vmatprep.subr.mxu0 0.0
    %687 = vmatpush1.msra.mxu0 0.0
    %688 = vmatprep.mubr.f32.mxu0 0.0
    %v689 = vand.u32 %v618, 4294901760
    %v690 = vsub.f32 %v618, %v689
    %v691 = vand.u32 %v690, 4294901760
    %v692 = vsub.f32 %v690, %v691
    %v693 = vand.u32 %v692, 4294901760
    %694 = vmatmul.mubr.f32.gmra.mrb[0].mxu0 %v693
    %v695 = vpop.f32.mrb[0].mxu0
    %v696 = vadd.f32 %v614, %v695
    %v697 = vpop.f32.mrb[0].mxu0
    %698 = vdwg.mxu0
    %699 = vmatprep.subr.mxu0 0.0
    %v700 = vand.u32 %v604, 4294901760
    %v701 = vsub.f32 %v604, %v700
    %v702 = vand.u32 %v701, 4294901760
    %v703 = vsub.f32 %v701, %v702
    %v704 = vand.u32 %v703, 4294901760
    %705 = vmatpush1.msra.mxu0 %v704
    %706 = vmatprep.subr.mxu0 0.0
    %v707 = vand.u32 %v605, 4294901760
    %v708 = vsub.f32 %v605, %v707
    %v709 = vand.u32 %v708, 4294901760
    %v710 = vsub.f32 %v708, %v709
    %v711 = vand.u32 %v710, 4294901760
    %712 = vmatpush1.msra.mxu0 %v711
    %713 = vmatprep.subr.mxu0 0.0
    %v714 = vand.u32 %v606, 4294901760
    %v715 = vsub.f32 %v606, %v714
    %v716 = vand.u32 %v715, 4294901760
    %v717 = vsub.f32 %v715, %v716
    %v718 = vand.u32 %v717, 4294901760
    %719 = vmatpush1.msra.mxu0 %v718
    %720 = vmatprep.subr.mxu0 0.0
    %v721 = vand.u32 %v607, 4294901760
    %v722 = vsub.f32 %v607, %v721
    %v723 = vand.u32 %v722, 4294901760
    %v724 = vsub.f32 %v722, %v723
    %v725 = vand.u32 %v724, 4294901760
    %726 = vmatpush1.msra.mxu0 %v725
    %727 = vmatprep.subr.mxu0 0.0
    %728 = vmatpush1.msra.mxu0 0.0
    %729 = vmatprep.subr.mxu0 0.0
    %730 = vmatpush1.msra.mxu0 0.0
    %731 = vmatprep.subr.mxu0 0.0
    %732 = vmatpush1.msra.mxu0 0.0
    %733 = vmatprep.subr.mxu0 0.0
    %734 = vmatpush1.msra.mxu0 0.0
    %735 = vmatprep.subr.mxu0 0.0
    %736 = vmatpush1.msra.mxu0 0.0
    %737 = vmatprep.subr.mxu0 0.0
    %738 = vmatpush1.msra.mxu0 0.0
    %739 = vmatprep.subr.mxu0 0.0
    %740 = vmatpush1.msra.mxu0 0.0
    %741 = vmatprep.subr.mxu0 0.0
    %742 = vmatpush1.msra.mxu0 0.0
    %743 = vmatprep.subr.mxu0 0.0
    %744 = vmatpush1.msra.mxu0 0.0
    %745 = vmatprep.subr.mxu0 0.0
    %746 = vmatpush1.msra.mxu0 0.0
    %747 = vmatprep.subr.mxu0 0.0
    %748 = vmatpush1.msra.mxu0 0.0
    %749 = vmatprep.subr.mxu0 0.0
    %750 = vmatpush1.msra.mxu0 0.0
    %751 = vmatprep.subr.mxu0 0.0
    %752 = vmatpush1.msra.mxu0 0.0
    %753 = vmatprep.subr.mxu0 0.0
    %754 = vmatpush1.msra.mxu0 0.0
    %755 = vmatprep.subr.mxu0 0.0
    %756 = vmatpush1.msra.mxu0 0.0
    %757 = vmatprep.subr.mxu0 0.0
    %758 = vmatpush1.msra.mxu0 0.0
    %759 = vmatprep.subr.mxu0 0.0
    %760 = vmatpush1.msra.mxu0 0.0
    %761 = vmatprep.subr.mxu0 0.0
    %762 = vmatpush1.msra.mxu0 0.0
    %763 = vmatprep.subr.mxu0 0.0
    %764 = vmatpush1.msra.mxu0 0.0
    %765 = vmatprep.subr.mxu0 0.0
    %766 = vmatpush1.msra.mxu0 0.0
    %767 = vmatprep.subr.mxu0 0.0
    %768 = vmatpush1.msra.mxu0 0.0
    %769 = vmatprep.subr.mxu0 0.0
    %770 = vmatpush1.msra.mxu0 0.0
    %771 = vmatprep.subr.mxu0 0.0
    %772 = vmatpush1.msra.mxu0 0.0
    %773 = vmatprep.subr.mxu0 0.0
    %774 = vmatpush1.msra.mxu0 0.0
    %775 = vmatprep.subr.mxu0 0.0
    %776 = vmatpush1.msra.mxu0 0.0
    %777 = vmatprep.subr.mxu0 0.0
    %778 = vmatpush1.msra.mxu0 0.0
    %779 = vmatprep.subr.mxu0 0.0
    %780 = vmatpush1.msra.mxu0 0.0
    %781 = vmatprep.subr.mxu0 0.0
    %782 = vmatpush1.msra.mxu0 0.0
    %783 = vmatprep.mubr.f32.mxu0 0.0
    %v784 = vand.u32 %v618, 4294901760
    %785 = vmatmul.mubr.f32.gmra.mrb[0].mxu0 %v784
    %v786 = vpop.f32.mrb[0].mxu0
    %v787 = vadd.f32 %v696, %v786
    %v788 = vpop.f32.mrb[0].mxu0
    %789 = vdwg.mxu0
    %790 = vmatprep.subr.mxu0 0.0
    %v791 = vand.u32 %v604, 4294901760
    %v792 = vsub.f32 %v604, %v791
    %793 = vmatpush1.msra.mxu0 %v792
    %794 = vmatprep.subr.mxu0 0.0
    %v795 = vand.u32 %v605, 4294901760
    %v796 = vsub.f32 %v605, %v795
    %797 = vmatpush1.msra.mxu0 %v796
    %798 = vmatprep.subr.mxu0 0.0
    %v799 = vand.u32 %v606, 4294901760
    %v800 = vsub.f32 %v606, %v799
    %801 = vmatpush1.msra.mxu0 %v800
    %802 = vmatprep.subr.mxu0 0.0
    %v803 = vand.u32 %v607, 4294901760
    %v804 = vsub.f32 %v607, %v803
    %805 = vmatpush1.msra.mxu0 %v804
    %806 = vmatprep.subr.mxu0 0.0
    %807 = vmatpush1.msra.mxu0 0.0
    %808 = vmatprep.subr.mxu0 0.0
    %809 = vmatpush1.msra.mxu0 0.0
    %810 = vmatprep.subr.mxu0 0.0
    %811 = vmatpush1.msra.mxu0 0.0
    %812 = vmatprep.subr.mxu0 0.0
    %813 = vmatpush1.msra.mxu0 0.0
    %814 = vmatprep.subr.mxu0 0.0
    %815 = vmatpush1.msra.mxu0 0.0
    %816 = vmatprep.subr.mxu0 0.0
    %817 = vmatpush1.msra.mxu0 0.0
    %818 = vmatprep.subr.mxu0 0.0
    %819 = vmatpush1.msra.mxu0 0.0
    %820 = vmatprep.subr.mxu0 0.0
    %821 = vmatpush1.msra.mxu0 0.0
    %822 = vmatprep.subr.mxu0 0.0
    %823 = vmatpush1.msra.mxu0 0.0
    %824 = vmatprep.subr.mxu0 0.0
    %825 = vmatpush1.msra.mxu0 0.0
    %826 = vmatprep.subr.mxu0 0.0
    %827 = vmatpush1.msra.mxu0 0.0
    %828 = vmatprep.subr.mxu0 0.0
    %829 = vmatpush1.msra.mxu0 0.0
    %830 = vmatprep.subr.mxu0 0.0
    %831 = vmatpush1.msra.mxu0 0.0
    %832 = vmatprep.subr.mxu0 0.0
    %833 = vmatpush1.msra.mxu0 0.0
    %834 = vmatprep.subr.mxu0 0.0
    %835 = vmatpush1.msra.mxu0 0.0
    %836 = vmatprep.subr.mxu0 0.0
    %837 = vmatpush1.msra.mxu0 0.0
    %838 = vmatprep.subr.mxu0 0.0
    %839 = vmatpush1.msra.mxu0 0.0
    %840 = vmatprep.subr.mxu0 0.0
    %841 = vmatpush1.msra.mxu0 0.0
    %842 = vmatprep.subr.mxu0 0.0
    %843 = vmatpush1.msra.mxu0 0.0
    %844 = vmatprep.subr.mxu0 0.0
    %845 = vmatpush1.msra.mxu0 0.0
    %846 = vmatprep.subr.mxu0 0.0
    %847 = vmatpush1.msra.mxu0 0.0
    %848 = vmatprep.subr.mxu0 0.0
    %849 = vmatpush1.msra.mxu0 0.0
    %850 = vmatprep.subr.mxu0 0.0
    %851 = vmatpush1.msra.mxu0 0.0
    %852 = vmatprep.subr.mxu0 0.0
    %853 = vmatpush1.msra.mxu0 0.0
    %854 = vmatprep.subr.mxu0 0.0
    %855 = vmatpush1.msra.mxu0 0.0
    %856 = vmatprep.subr.mxu0 0.0
    %857 = vmatpush1.msra.mxu0 0.0
    %858 = vmatprep.subr.mxu0 0.0
    %859 = vmatpush1.msra.mxu0 0.0
    %860 = vmatprep.subr.mxu0 0.0
    %861 = vmatpush1.msra.mxu0 0.0
    %862 = vmatprep.mubr.f32.mxu0 0.0
    %v863 = vand.u32 %v618, 4294901760
    %v864 = vsub.f32 %v618, %v863
    %865 = vmatmul.mubr.f32.gmra.mrb[0].mxu0 %v864
    %v866 = vpop.f32.mrb[0].mxu0
    %v867 = vadd.f32 %v787, %v866
    %v868 = vpop.f32.mrb[0].mxu0
    %869 = vdwg.mxu0
    %870 = vmatprep.subr.mxu0 0.0
    %v871 = vand.u32 %v604, 4294901760
    %872 = vmatpush1.msra.mxu0 %v871
    %873 = vmatprep.subr.mxu0 0.0
    %v874 = vand.u32 %v605, 4294901760
    %875 = vmatpush1.msra.mxu0 %v874
    %876 = vmatprep.subr.mxu0 0.0
    %v877 = vand.u32 %v606, 4294901760
    %878 = vmatpush1.msra.mxu0 %v877
    %879 = vmatprep.subr.mxu0 0.0
    %v880 = vand.u32 %v607, 4294901760
    %881 = vmatpush1.msra.mxu0 %v880
    %882 = vmatprep.subr.mxu0 0.0
    %883 = vmatpush1.msra.mxu0 0.0
    %884 = vmatprep.subr.mxu0 0.0
    %885 = vmatpush1.msra.mxu0 0.0
    %886 = vmatprep.subr.mxu0 0.0
    %887 = vmatpush1.msra.mxu0 0.0
    %888 = vmatprep.subr.mxu0 0.0
    %889 = vmatpush1.msra.mxu0 0.0
    %890 = vmatprep.subr.mxu0 0.0
    %891 = vmatpush1.msra.mxu0 0.0
    %892 = vmatprep.subr.mxu0 0.0
    %893 = vmatpush1.msra.mxu0 0.0
    %894 = vmatprep.subr.mxu0 0.0
    %895 = vmatpush1.msra.mxu0 0.0
    %896 = vmatprep.subr.mxu0 0.0
    %897 = vmatpush1.msra.mxu0 0.0
    %898 = vmatprep.subr.mxu0 0.0
    %899 = vmatpush1.msra.mxu0 0.0
    %900 = vmatprep.subr.mxu0 0.0
    %901 = vmatpush1.msra.mxu0 0.0
    %902 = vmatprep.subr.mxu0 0.0
    %903 = vmatpush1.msra.mxu0 0.0
    %904 = vmatprep.subr.mxu0 0.0
    %905 = vmatpush1.msra.mxu0 0.0
    %906 = vmatprep.subr.mxu0 0.0
    %907 = vmatpush1.msra.mxu0 0.0
    %908 = vmatprep.subr.mxu0 0.0
    %909 = vmatpush1.msra.mxu0 0.0
    %910 = vmatprep.subr.mxu0 0.0
    %911 = vmatpush1.msra.mxu0 0.0
    %912 = vmatprep.subr.mxu0 0.0
    %913 = vmatpush1.msra.mxu0 0.0
    %914 = vmatprep.subr.mxu0 0.0
    %915 = vmatpush1.msra.mxu0 0.0
    %916 = vmatprep.subr.mxu0 0.0
    %917 = vmatpush1.msra.mxu0 0.0
    %918 = vmatprep.subr.mxu0 0.0
    %919 = vmatpush1.msra.mxu0 0.0
    %920 = vmatprep.subr.mxu0 0.0
    %921 = vmatpush1.msra.mxu0 0.0
    %922 = vmatprep.subr.mxu0 0.0
    %923 = vmatpush1.msra.mxu0 0.0
    %924 = vmatprep.subr.mxu0 0.0
    %925 = vmatpush1.msra.mxu0 0.0
    %926 = vmatprep.subr.mxu0 0.0
    %927 = vmatpush1.msra.mxu0 0.0
    %928 = vmatprep.subr.mxu0 0.0
    %929 = vmatpush1.msra.mxu0 0.0
    %930 = vmatprep.subr.mxu0 0.0
    %931 = vmatpush1.msra.mxu0 0.0
    %932 = vmatprep.subr.mxu0 0.0
    %933 = vmatpush1.msra.mxu0 0.0
    %934 = vmatprep.subr.mxu0 0.0
    %935 = vmatpush1.msra.mxu0 0.0
    %936 = vmatprep.subr.mxu0 0.0
    %937 = vmatpush1.msra.mxu0 0.0
    %938 = vmatprep.mubr.f32.mxu0 0.0
    %v939 = vand.u32 %v618, 4294901760
    %v940 = vsub.f32 %v618, %v939
    %v941 = vand.u32 %v940, 4294901760
    %942 = vmatmul.mubr.f32.gmra.mrb[0].mxu0 %v941
    %v943 = vpop.f32.mrb[0].mxu0
    %v944 = vadd.f32 %v867, %v943
    %v945 = vpop.f32.mrb[0].mxu0
    %946 = vdwg.mxu0
    %947 = vmatprep.subr.mxu0 0.0
    %v948 = vand.u32 %v604, 4294901760
    %v949 = vsub.f32 %v604, %v948
    %v950 = vand.u32 %v949, 4294901760
    %951 = vmatpush1.msra.mxu0 %v950
    %952 = vmatprep.subr.mxu0 0.0
    %v953 = vand.u32 %v605, 4294901760
    %v954 = vsub.f32 %v605, %v953
    %v955 = vand.u32 %v954, 4294901760
    %956 = vmatpush1.msra.mxu0 %v955
    %957 = vmatprep.subr.mxu0 0.0
    %v958 = vand.u32 %v606, 4294901760
    %v959 = vsub.f32 %v606, %v958
    %v960 = vand.u32 %v959, 4294901760
    %961 = vmatpush1.msra.mxu0 %v960
    %962 = vmatprep.subr.mxu0 0.0
    %v963 = vand.u32 %v607, 4294901760
    %v964 = vsub.f32 %v607, %v963
    %v965 = vand.u32 %v964, 4294901760
    %966 = vmatpush1.msra.mxu0 %v965
    %967 = vmatprep.subr.mxu0 0.0
    %968 = vmatpush1.msra.mxu0 0.0
    %969 = vmatprep.subr.mxu0 0.0
    %970 = vmatpush1.msra.mxu0 0.0
    %971 = vmatprep.subr.mxu0 0.0
    %972 = vmatpush1.msra.mxu0 0.0
    %973 = vmatprep.subr.mxu0 0.0
    %974 = vmatpush1.msra.mxu0 0.0
    %975 = vmatprep.subr.mxu0 0.0
    %976 = vmatpush1.msra.mxu0 0.0
    %977 = vmatprep.subr.mxu0 0.0
    %978 = vmatpush1.msra.mxu0 0.0
    %979 = vmatprep.subr.mxu0 0.0
    %980 = vmatpush1.msra.mxu0 0.0
    %981 = vmatprep.subr.mxu0 0.0
    %982 = vmatpush1.msra.mxu0 0.0
    %983 = vmatprep.subr.mxu0 0.0
    %984 = vmatpush1.msra.mxu0 0.0
    %985 = vmatprep.subr.mxu0 0.0
    %986 = vmatpush1.msra.mxu0 0.0
    %987 = vmatprep.subr.mxu0 0.0
    %988 = vmatpush1.msra.mxu0 0.0
    %989 = vmatprep.subr.mxu0 0.0
    %990 = vmatpush1.msra.mxu0 0.0
    %991 = vmatprep.subr.mxu0 0.0
    %992 = vmatpush1.msra.mxu0 0.0
    %993 = vmatprep.subr.mxu0 0.0
    %994 = vmatpush1.msra.mxu0 0.0
    %995 = vmatprep.subr.mxu0 0.0
    %996 = vmatpush1.msra.mxu0 0.0
    %997 = vmatprep.subr.mxu0 0.0
    %998 = vmatpush1.msra.mxu0 0.0
    %999 = vmatprep.subr.mxu0 0.0
    %1000 = vmatpush1.msra.mxu0 0.0
    %1001 = vmatprep.subr.mxu0 0.0
    %1002 = vmatpush1.msra.mxu0 0.0
    %1003 = vmatprep.subr.mxu0 0.0
    %1004 = vmatpush1.msra.mxu0 0.0
    %1005 = vmatprep.subr.mxu0 0.0
    %1006 = vmatpush1.msra.mxu0 0.0
    %1007 = vmatprep.subr.mxu0 0.0
    %1008 = vmatpush1.msra.mxu0 0.0
    %1009 = vmatprep.subr.mxu0 0.0
    %1010 = vmatpush1.msra.mxu0 0.0
    %1011 = vmatprep.subr.mxu0 0.0
    %1012 = vmatpush1.msra.mxu0 0.0
    %1013 = vmatprep.subr.mxu0 0.0
    %1014 = vmatpush1.msra.mxu0 0.0
    %1015 = vmatprep.subr.mxu0 0.0
    %1016 = vmatpush1.msra.mxu0 0.0
    %1017 = vmatprep.subr.mxu0 0.0
    %1018 = vmatpush1.msra.mxu0 0.0
    %1019 = vmatprep.subr.mxu0 0.0
    %1020 = vmatpush1.msra.mxu0 0.0
    %1021 = vmatprep.subr.mxu0 0.0
    %1022 = vmatpush1.msra.mxu0 0.0
    %1023 = vmatprep.mubr.f32.mxu0 0.0
    %v1024 = vand.u32 %v618, 4294901760
    %1025 = vmatmul.mubr.f32.gmra.mrb[0].mxu0 %v1024
    %v1026 = vpop.f32.mrb[0].mxu0
    %v1027 = vadd.f32 %v944, %v1026
    %v1028 = vpop.f32.mrb[0].mxu0
    %1029 = vdwg.mxu0
    %1030 = vmatprep.subr.mxu0 0.0
    %v1031 = vand.u32 %v604, 4294901760
    %1032 = vmatpush1.msra.mxu0 %v1031
    %1033 = vmatprep.subr.mxu0 0.0
    %v1034 = vand.u32 %v605, 4294901760
    %1035 = vmatpush1.msra.mxu0 %v1034
    %1036 = vmatprep.subr.mxu0 0.0
    %v1037 = vand.u32 %v606, 4294901760
    %1038 = vmatpush1.msra.mxu0 %v1037
    %1039 = vmatprep.subr.mxu0 0.0
    %v1040 = vand.u32 %v607, 4294901760
    %1041 = vmatpush1.msra.mxu0 %v1040
    %1042 = vmatprep.subr.mxu0 0.0
    %1043 = vmatpush1.msra.mxu0 0.0
    %1044 = vmatprep.subr.mxu0 0.0
    %1045 = vmatpush1.msra.mxu0 0.0
    %1046 = vmatprep.subr.mxu0 0.0
    %1047 = vmatpush1.msra.mxu0 0.0
    %1048 = vmatprep.subr.mxu0 0.0
    %1049 = vmatpush1.msra.mxu0 0.0
    %1050 = vmatprep.subr.mxu0 0.0
    %1051 = vmatpush1.msra.mxu0 0.0
    %1052 = vmatprep.subr.mxu0 0.0
    %1053 = vmatpush1.msra.mxu0 0.0
    %1054 = vmatprep.subr.mxu0 0.0
    %1055 = vmatpush1.msra.mxu0 0.0
    %1056 = vmatprep.subr.mxu0 0.0
    %1057 = vmatpush1.msra.mxu0 0.0
    %1058 = vmatprep.subr.mxu0 0.0
    %1059 = vmatpush1.msra.mxu0 0.0
    %1060 = vmatprep.subr.mxu0 0.0
    %1061 = vmatpush1.msra.mxu0 0.0
    %1062 = vmatprep.subr.mxu0 0.0
    %1063 = vmatpush1.msra.mxu0 0.0
    %1064 = vmatprep.subr.mxu0 0.0
    %1065 = vmatpush1.msra.mxu0 0.0
    %1066 = vmatprep.subr.mxu0 0.0
    %1067 = vmatpush1.msra.mxu0 0.0
    %1068 = vmatprep.subr.mxu0 0.0
    %1069 = vmatpush1.msra.mxu0 0.0
    %1070 = vmatprep.subr.mxu0 0.0
    %1071 = vmatpush1.msra.mxu0 0.0
    %1072 = vmatprep.subr.mxu0 0.0
    %1073 = vmatpush1.msra.mxu0 0.0
    %1074 = vmatprep.subr.mxu0 0.0
    %1075 = vmatpush1.msra.mxu0 0.0
    %1076 = vmatprep.subr.mxu0 0.0
    %1077 = vmatpush1.msra.mxu0 0.0
    %1078 = vmatprep.subr.mxu0 0.0
    %1079 = vmatpush1.msra.mxu0 0.0
    %1080 = vmatprep.subr.mxu0 0.0
    %1081 = vmatpush1.msra.mxu0 0.0
    %1082 = vmatprep.subr.mxu0 0.0
    %1083 = vmatpush1.msra.mxu0 0.0
    %1084 = vmatprep.subr.mxu0 0.0
    %1085 = vmatpush1.msra.mxu0 0.0
    %1086 = vmatprep.subr.mxu0 0.0
    %1087 = vmatpush1.msra.mxu0 0.0
    %1088 = vmatprep.subr.mxu0 0.0
    %1089 = vmatpush1.msra.mxu0 0.0
    %1090 = vmatprep.subr.mxu0 0.0
    %1091 = vmatpush1.msra.mxu0 0.0
    %1092 = vmatprep.subr.mxu0 0.0
    %1093 = vmatpush1.msra.mxu0 0.0
    %1094 = vmatprep.subr.mxu0 0.0
    %1095 = vmatpush1.msra.mxu0 0.0
    %1096 = vmatprep.subr.mxu0 0.0
    %1097 = vmatpush1.msra.mxu0 0.0
    %1098 = vmatprep.mubr.f32.mxu0 0.0
    %v1099 = vand.u32 %v618, 4294901760
    %1100 = vmatmul.mubr.f32.gmra.mrb[0].mxu0 %v1099
    %v1101 = vpop.f32.mrb[0].mxu0
    %v1102 = vadd.f32 %v1027, %v1101
    %v1103 = vpop.f32.mrb[0].mxu0
    %1104 = vdwg.mxu0
    %v1105 = vmax.f32 %v1102, 0.0
    %s1106 = scalar_lea.vmem [#allocation6], 128
    %v1107 = vld [vmem:[%s1106] sm:$0xff]
    %v1108 = vld [vmem:[%s1106 + $0x8] sm:$0xff]
    %s1109 = scalar_lea.vmem %s2, 2
    %v1110 = vld [vmem:[%s1109] sm:$0x1]
    %v1112 = vlaneseq
    %v1113 = vshrl.u32 %v1112, 7
    %v1114 = vsub.s32 0, %v1113
    %v1115 = vrot.slane %v1110, %v1114
    %vm1117 = vcmask 130048
    %v1119 = vsel %vm1117, %v1105, 0
    %1121 = vmatprep.subr.mxu0 0.0
    %v1122 = vand.u32 %v1107, 4294901760
    %1123 = vmatpush1.msra.mxu0 %v1122
    %1124 = vmatprep.subr.mxu0 0.0
    %v1125 = vand.u32 %v1108, 4294901760
    %1126 = vmatpush1.msra.mxu0 %v1125
    %1127 = vmatprep.subr.mxu0 0.0
    %1128 = vmatpush1.msra.mxu0 0.0
    %1129 = vmatprep.subr.mxu0 0.0
    %1130 = vmatpush1.msra.mxu0 0.0
    %1131 = vmatprep.subr.mxu0 0.0
    %1132 = vmatpush1.msra.mxu0 0.0
    %1133 = vmatprep.subr.mxu0 0.0
    %1134 = vmatpush1.msra.mxu0 0.0
    %1135 = vmatprep.subr.mxu0 0.0
    %1136 = vmatpush1.msra.mxu0 0.0
    %1137 = vmatprep.subr.mxu0 0.0
    %1138 = vmatpush1.msra.mxu0 0.0
    %1139 = vmatprep.subr.mxu0 0.0
    %1140 = vmatpush1.msra.mxu0 0.0
    %1141 = vmatprep.subr.mxu0 0.0
    %1142 = vmatpush1.msra.mxu0 0.0
    %1143 = vmatprep.subr.mxu0 0.0
    %1144 = vmatpush1.msra.mxu0 0.0
    %1145 = vmatprep.subr.mxu0 0.0
    %1146 = vmatpush1.msra.mxu0 0.0
    %1147 = vmatprep.subr.mxu0 0.0
    %1148 = vmatpush1.msra.mxu0 0.0
    %1149 = vmatprep.subr.mxu0 0.0
    %1150 = vmatpush1.msra.mxu0 0.0
    %1151 = vmatprep.subr.mxu0 0.0
    %1152 = vmatpush1.msra.mxu0 0.0
    %1153 = vmatprep.subr.mxu0 0.0
    %1154 = vmatpush1.msra.mxu0 0.0
    %1155 = vmatprep.subr.mxu0 0.0
    %1156 = vmatpush1.msra.mxu0 0.0
    %1157 = vmatprep.subr.mxu0 0.0
    %1158 = vmatpush1.msra.mxu0 0.0
    %1159 = vmatprep.subr.mxu0 0.0
    %1160 = vmatpush1.msra.mxu0 0.0
    %1161 = vmatprep.subr.mxu0 0.0
    %1162 = vmatpush1.msra.mxu0 0.0
    %1163 = vmatprep.subr.mxu0 0.0
    %1164 = vmatpush1.msra.mxu0 0.0
    %1165 = vmatprep.subr.mxu0 0.0
    %1166 = vmatpush1.msra.mxu0 0.0
    %1167 = vmatprep.subr.mxu0 0.0
    %1168 = vmatpush1.msra.mxu0 0.0
    %1169 = vmatprep.subr.mxu0 0.0
    %1170 = vmatpush1.msra.mxu0 0.0
    %1171 = vmatprep.subr.mxu0 0.0
    %1172 = vmatpush1.msra.mxu0 0.0
    %1173 = vmatprep.subr.mxu0 0.0
    %1174 = vmatpush1.msra.mxu0 0.0
    %1175 = vmatprep.subr.mxu0 0.0
    %1176 = vmatpush1.msra.mxu0 0.0
    %1177 = vmatprep.subr.mxu0 0.0
    %1178 = vmatpush1.msra.mxu0 0.0
    %1179 = vmatprep.subr.mxu0 0.0
    %1180 = vmatpush1.msra.mxu0 0.0
    %1181 = vmatprep.subr.mxu0 0.0
    %1182 = vmatpush1.msra.mxu0 0.0
    %1183 = vmatprep.subr.mxu0 0.0
    %1184 = vmatpush1.msra.mxu0 0.0
    %1185 = vmatprep.subr.mxu0 0.0
    %1186 = vmatpush1.msra.mxu0 0.0
    %1187 = vmatprep.mubr.f32.mxu0 0.0
    %v1188 = vand.u32 %v1119, 4294901760
    %v1189 = vsub.f32 %v1119, %v1188
    %v1190 = vand.u32 %v1189, 4294901760
    %v1191 = vsub.f32 %v1189, %v1190
    %v1192 = vand.u32 %v1191, 4294901760
    %1193 = vmatmul.mubr.f32.gmra.mrb[0].mxu0 %v1192
    %v1194 = vpop.f32.mrb[0].mxu0
    %v1195 = vadd.f32 %v1115, %v1194
    %v1196 = vpop.f32.mrb[0].mxu0
    %1197 = vdwg.mxu0
    %1198 = vmatprep.subr.mxu0 0.0
    %v1199 = vand.u32 %v1107, 4294901760
    %v1200 = vsub.f32 %v1107, %v1199
    %v1201 = vand.u32 %v1200, 4294901760
    %v1202 = vsub.f32 %v1200, %v1201
    %v1203 = vand.u32 %v1202, 4294901760
    %1204 = vmatpush1.msra.mxu0 %v1203
    %1205 = vmatprep.subr.mxu0 0.0
    %v1206 = vand.u32 %v1108, 4294901760
    %v1207 = vsub.f32 %v1108, %v1206
    %v1208 = vand.u32 %v1207, 4294901760
    %v1209 = vsub.f32 %v1207, %v1208
    %v1210 = vand.u32 %v1209, 4294901760
    %1211 = vmatpush1.msra.mxu0 %v1210
    %1212 = vmatprep.subr.mxu0 0.0
    %1213 = vmatpush1.msra.mxu0 0.0
    %1214 = vmatprep.subr.mxu0 0.0
    %1215 = vmatpush1.msra.mxu0 0.0
    %1216 = vmatprep.subr.mxu0 0.0
    %1217 = vmatpush1.msra.mxu0 0.0
    %1218 = vmatprep.subr.mxu0 0.0
    %1219 = vmatpush1.msra.mxu0 0.0
    %1220 = vmatprep.subr.mxu0 0.0
    %1221 = vmatpush1.msra.mxu0 0.0
    %1222 = vmatprep.subr.mxu0 0.0
    %1223 = vmatpush1.msra.mxu0 0.0
    %1224 = vmatprep.subr.mxu0 0.0
    %1225 = vmatpush1.msra.mxu0 0.0
    %1226 = vmatprep.subr.mxu0 0.0
    %1227 = vmatpush1.msra.mxu0 0.0
    %1228 = vmatprep.subr.mxu0 0.0
    %1229 = vmatpush1.msra.mxu0 0.0
    %1230 = vmatprep.subr.mxu0 0.0
    %1231 = vmatpush1.msra.mxu0 0.0
    %1232 = vmatprep.subr.mxu0 0.0
    %1233 = vmatpush1.msra.mxu0 0.0
    %1234 = vmatprep.subr.mxu0 0.0
    %1235 = vmatpush1.msra.mxu0 0.0
    %1236 = vmatprep.subr.mxu0 0.0
    %1237 = vmatpush1.msra.mxu0 0.0
    %1238 = vmatprep.subr.mxu0 0.0
    %1239 = vmatpush1.msra.mxu0 0.0
    %1240 = vmatprep.subr.mxu0 0.0
    %1241 = vmatpush1.msra.mxu0 0.0
    %1242 = vmatprep.subr.mxu0 0.0
    %1243 = vmatpush1.msra.mxu0 0.0
    %1244 = vmatprep.subr.mxu0 0.0
    %1245 = vmatpush1.msra.mxu0 0.0
    %1246 = vmatprep.subr.mxu0 0.0
    %1247 = vmatpush1.msra.mxu0 0.0
    %1248 = vmatprep.subr.mxu0 0.0
    %1249 = vmatpush1.msra.mxu0 0.0
    %1250 = vmatprep.subr.mxu0 0.0
    %1251 = vmatpush1.msra.mxu0 0.0
    %1252 = vmatprep.subr.mxu0 0.0
    %1253 = vmatpush1.msra.mxu0 0.0
    %1254 = vmatprep.subr.mxu0 0.0
    %1255 = vmatpush1.msra.mxu0 0.0
    %1256 = vmatprep.subr.mxu0 0.0
    %1257 = vmatpush1.msra.mxu0 0.0
    %1258 = vmatprep.subr.mxu0 0.0
    %1259 = vmatpush1.msra.mxu0 0.0
    %1260 = vmatprep.subr.mxu0 0.0
    %1261 = vmatpush1.msra.mxu0 0.0
    %1262 = vmatprep.subr.mxu0 0.0
    %1263 = vmatpush1.msra.mxu0 0.0
    %1264 = vmatprep.subr.mxu0 0.0
    %1265 = vmatpush1.msra.mxu0 0.0
    %1266 = vmatprep.subr.mxu0 0.0
    %1267 = vmatpush1.msra.mxu0 0.0
    %1268 = vmatprep.subr.mxu0 0.0
    %1269 = vmatpush1.msra.mxu0 0.0
    %1270 = vmatprep.subr.mxu0 0.0
    %1271 = vmatpush1.msra.mxu0 0.0
    %1272 = vmatprep.mubr.f32.mxu0 0.0
    %v1273 = vand.u32 %v1119, 4294901760
    %1274 = vmatmul.mubr.f32.gmra.mrb[0].mxu0 %v1273
    %v1275 = vpop.f32.mrb[0].mxu0
    %v1276 = vadd.f32 %v1195, %v1275
    %v1277 = vpop.f32.mrb[0].mxu0
    %1278 = vdwg.mxu0
    %1279 = vmatprep.subr.mxu0 0.0
    %v1280 = vand.u32 %v1107, 4294901760
    %v1281 = vsub.f32 %v1107, %v1280
    %1282 = vmatpush1.msra.mxu0 %v1281
    %1283 = vmatprep.subr.mxu0 0.0
    %v1284 = vand.u32 %v1108, 4294901760
    %v1285 = vsub.f32 %v1108, %v1284
    %1286 = vmatpush1.msra.mxu0 %v1285
    %1287 = vmatprep.subr.mxu0 0.0
    %1288 = vmatpush1.msra.mxu0 0.0
    %1289 = vmatprep.subr.mxu0 0.0
    %1290 = vmatpush1.msra.mxu0 0.0
    %1291 = vmatprep.subr.mxu0 0.0
    %1292 = vmatpush1.msra.mxu0 0.0
    %1293 = vmatprep.subr.mxu0 0.0
    %1294 = vmatpush1.msra.mxu0 0.0
    %1295 = vmatprep.subr.mxu0 0.0
    %1296 = vmatpush1.msra.mxu0 0.0
    %1297 = vmatprep.subr.mxu0 0.0
    %1298 = vmatpush1.msra.mxu0 0.0
    %1299 = vmatprep.subr.mxu0 0.0
    %1300 = vmatpush1.msra.mxu0 0.0
    %1301 = vmatprep.subr.mxu0 0.0
    %1302 = vmatpush1.msra.mxu0 0.0
    %1303 = vmatprep.subr.mxu0 0.0
    %1304 = vmatpush1.msra.mxu0 0.0
    %1305 = vmatprep.subr.mxu0 0.0
    %1306 = vmatpush1.msra.mxu0 0.0
    %1307 = vmatprep.subr.mxu0 0.0
    %1308 = vmatpush1.msra.mxu0 0.0
    %1309 = vmatprep.subr.mxu0 0.0
    %1310 = vmatpush1.msra.mxu0 0.0
    %1311 = vmatprep.subr.mxu0 0.0
    %1312 = vmatpush1.msra.mxu0 0.0
    %1313 = vmatprep.subr.mxu0 0.0
    %1314 = vmatpush1.msra.mxu0 0.0
    %1315 = vmatprep.subr.mxu0 0.0
    %1316 = vmatpush1.msra.mxu0 0.0
    %1317 = vmatprep.subr.mxu0 0.0
    %1318 = vmatpush1.msra.mxu0 0.0
    %1319 = vmatprep.subr.mxu0 0.0
    %1320 = vmatpush1.msra.mxu0 0.0
    %1321 = vmatprep.subr.mxu0 0.0
    %1322 = vmatpush1.msra.mxu0 0.0
    %1323 = vmatprep.subr.mxu0 0.0
    %1324 = vmatpush1.msra.mxu0 0.0
    %1325 = vmatprep.subr.mxu0 0.0
    %1326 = vmatpush1.msra.mxu0 0.0
    %1327 = vmatprep.subr.mxu0 0.0
    %1328 = vmatpush1.msra.mxu0 0.0
    %1329 = vmatprep.subr.mxu0 0.0
    %1330 = vmatpush1.msra.mxu0 0.0
    %1331 = vmatprep.subr.mxu0 0.0
    %1332 = vmatpush1.msra.mxu0 0.0
    %1333 = vmatprep.subr.mxu0 0.0
    %1334 = vmatpush1.msra.mxu0 0.0
    %1335 = vmatprep.subr.mxu0 0.0
    %1336 = vmatpush1.msra.mxu0 0.0
    %1337 = vmatprep.subr.mxu0 0.0
    %1338 = vmatpush1.msra.mxu0 0.0
    %1339 = vmatprep.subr.mxu0 0.0
    %1340 = vmatpush1.msra.mxu0 0.0
    %1341 = vmatprep.subr.mxu0 0.0
    %1342 = vmatpush1.msra.mxu0 0.0
    %1343 = vmatprep.subr.mxu0 0.0
    %1344 = vmatpush1.msra.mxu0 0.0
    %1345 = vmatprep.subr.mxu0 0.0
    %1346 = vmatpush1.msra.mxu0 0.0
    %1347 = vmatprep.mubr.f32.mxu0 0.0
    %v1348 = vand.u32 %v1119, 4294901760
    %v1349 = vsub.f32 %v1119, %v1348
    %1350 = vmatmul.mubr.f32.gmra.mrb[0].mxu0 %v1349
    %v1351 = vpop.f32.mrb[0].mxu0
    %v1352 = vadd.f32 %v1276, %v1351
    %v1353 = vpop.f32.mrb[0].mxu0
    %1354 = vdwg.mxu0
    %1355 = vmatprep.subr.mxu0 0.0
    %v1356 = vand.u32 %v1107, 4294901760
    %1357 = vmatpush1.msra.mxu0 %v1356
    %1358 = vmatprep.subr.mxu0 0.0
    %v1359 = vand.u32 %v1108, 4294901760
    %1360 = vmatpush1.msra.mxu0 %v1359
    %1361 = vmatprep.subr.mxu0 0.0
    %1362 = vmatpush1.msra.mxu0 0.0
    %1363 = vmatprep.subr.mxu0 0.0
    %1364 = vmatpush1.msra.mxu0 0.0
    %1365 = vmatprep.subr.mxu0 0.0
    %1366 = vmatpush1.msra.mxu0 0.0
    %1367 = vmatprep.subr.mxu0 0.0
    %1368 = vmatpush1.msra.mxu0 0.0
    %1369 = vmatprep.subr.mxu0 0.0
    %1370 = vmatpush1.msra.mxu0 0.0
    %1371 = vmatprep.subr.mxu0 0.0
    %1372 = vmatpush1.msra.mxu0 0.0
    %1373 = vmatprep.subr.mxu0 0.0
    %1374 = vmatpush1.msra.mxu0 0.0
    %1375 = vmatprep.subr.mxu0 0.0
    %1376 = vmatpush1.msra.mxu0 0.0
    %1377 = vmatprep.subr.mxu0 0.0
    %1378 = vmatpush1.msra.mxu0 0.0
    %1379 = vmatprep.subr.mxu0 0.0
    %1380 = vmatpush1.msra.mxu0 0.0
    %1381 = vmatprep.subr.mxu0 0.0
    %1382 = vmatpush1.msra.mxu0 0.0
    %1383 = vmatprep.subr.mxu0 0.0
    %1384 = vmatpush1.msra.mxu0 0.0
    %1385 = vmatprep.subr.mxu0 0.0
    %1386 = vmatpush1.msra.mxu0 0.0
    %1387 = vmatprep.subr.mxu0 0.0
    %1388 = vmatpush1.msra.mxu0 0.0
    %1389 = vmatprep.subr.mxu0 0.0
    %1390 = vmatpush1.msra.mxu0 0.0
    %1391 = vmatprep.subr.mxu0 0.0
    %1392 = vmatpush1.msra.mxu0 0.0
    %1393 = vmatprep.subr.mxu0 0.0
    %1394 = vmatpush1.msra.mxu0 0.0
    %1395 = vmatprep.subr.mxu0 0.0
    %1396 = vmatpush1.msra.mxu0 0.0
    %1397 = vmatprep.subr.mxu0 0.0
    %1398 = vmatpush1.msra.mxu0 0.0
    %1399 = vmatprep.subr.mxu0 0.0
    %1400 = vmatpush1.msra.mxu0 0.0
    %1401 = vmatprep.subr.mxu0 0.0
    %1402 = vmatpush1.msra.mxu0 0.0
    %1403 = vmatprep.subr.mxu0 0.0
    %1404 = vmatpush1.msra.mxu0 0.0
    %1405 = vmatprep.subr.mxu0 0.0
    %1406 = vmatpush1.msra.mxu0 0.0
    %1407 = vmatprep.subr.mxu0 0.0
    %1408 = vmatpush1.msra.mxu0 0.0
    %1409 = vmatprep.subr.mxu0 0.0
    %1410 = vmatpush1.msra.mxu0 0.0
    %1411 = vmatprep.subr.mxu0 0.0
    %1412 = vmatpush1.msra.mxu0 0.0
    %1413 = vmatprep.subr.mxu0 0.0
    %1414 = vmatpush1.msra.mxu0 0.0
    %1415 = vmatprep.subr.mxu0 0.0
    %1416 = vmatpush1.msra.mxu0 0.0
    %1417 = vmatprep.subr.mxu0 0.0
    %1418 = vmatpush1.msra.mxu0 0.0
    %1419 = vmatprep.subr.mxu0 0.0
    %1420 = vmatpush1.msra.mxu0 0.0
    %1421 = vmatprep.mubr.f32.mxu0 0.0
    %v1422 = vand.u32 %v1119, 4294901760
    %v1423 = vsub.f32 %v1119, %v1422
    %v1424 = vand.u32 %v1423, 4294901760
    %1425 = vmatmul.mubr.f32.gmra.mrb[0].mxu0 %v1424
    %v1426 = vpop.f32.mrb[0].mxu0
    %v1427 = vadd.f32 %v1352, %v1426
    %v1428 = vpop.f32.mrb[0].mxu0
    %1429 = vdwg.mxu0
    %1430 = vmatprep.subr.mxu0 0.0
    %v1431 = vand.u32 %v1107, 4294901760
    %v1432 = vsub.f32 %v1107, %v1431
    %v1433 = vand.u32 %v1432, 4294901760
    %1434 = vmatpush1.msra.mxu0 %v1433
    %1435 = vmatprep.subr.mxu0 0.0
    %v1436 = vand.u32 %v1108, 4294901760
    %v1437 = vsub.f32 %v1108, %v1436
    %v1438 = vand.u32 %v1437, 4294901760
    %1439 = vmatpush1.msra.mxu0 %v1438
    %1440 = vmatprep.subr.mxu0 0.0
    %1441 = vmatpush1.msra.mxu0 0.0
    %1442 = vmatprep.subr.mxu0 0.0
    %1443 = vmatpush1.msra.mxu0 0.0
    %1444 = vmatprep.subr.mxu0 0.0
    %1445 = vmatpush1.msra.mxu0 0.0
    %1446 = vmatprep.subr.mxu0 0.0
    %1447 = vmatpush1.msra.mxu0 0.0
    %1448 = vmatprep.subr.mxu0 0.0
    %1449 = vmatpush1.msra.mxu0 0.0
    %1450 = vmatprep.subr.mxu0 0.0
    %1451 = vmatpush1.msra.mxu0 0.0
    %1452 = vmatprep.subr.mxu0 0.0
    %1453 = vmatpush1.msra.mxu0 0.0
    %1454 = vmatprep.subr.mxu0 0.0
    %1455 = vmatpush1.msra.mxu0 0.0
    %1456 = vmatprep.subr.mxu0 0.0
    %1457 = vmatpush1.msra.mxu0 0.0
    %1458 = vmatprep.subr.mxu0 0.0
    %1459 = vmatpush1.msra.mxu0 0.0
    %1460 = vmatprep.subr.mxu0 0.0
    %1461 = vmatpush1.msra.mxu0 0.0
    %1462 = vmatprep.subr.mxu0 0.0
    %1463 = vmatpush1.msra.mxu0 0.0
    %1464 = vmatprep.subr.mxu0 0.0
    %1465 = vmatpush1.msra.mxu0 0.0
    %1466 = vmatprep.subr.mxu0 0.0
    %1467 = vmatpush1.msra.mxu0 0.0
    %1468 = vmatprep.subr.mxu0 0.0
    %1469 = vmatpush1.msra.mxu0 0.0
    %1470 = vmatprep.subr.mxu0 0.0
    %1471 = vmatpush1.msra.mxu0 0.0
    %1472 = vmatprep.subr.mxu0 0.0
    %1473 = vmatpush1.msra.mxu0 0.0
    %1474 = vmatprep.subr.mxu0 0.0
    %1475 = vmatpush1.msra.mxu0 0.0
    %1476 = vmatprep.subr.mxu0 0.0
    %1477 = vmatpush1.msra.mxu0 0.0
    %1478 = vmatprep.subr.mxu0 0.0
    %1479 = vmatpush1.msra.mxu0 0.0
    %1480 = vmatprep.subr.mxu0 0.0
    %1481 = vmatpush1.msra.mxu0 0.0
    %1482 = vmatprep.subr.mxu0 0.0
    %1483 = vmatpush1.msra.mxu0 0.0
    %1484 = vmatprep.subr.mxu0 0.0
    %1485 = vmatpush1.msra.mxu0 0.0
    %1486 = vmatprep.subr.mxu0 0.0
    %1487 = vmatpush1.msra.mxu0 0.0
    %1488 = vmatprep.subr.mxu0 0.0
    %1489 = vmatpush1.msra.mxu0 0.0
    %1490 = vmatprep.subr.mxu0 0.0
    %1491 = vmatpush1.msra.mxu0 0.0
    %1492 = vmatprep.subr.mxu0 0.0
    %1493 = vmatpush1.msra.mxu0 0.0
    %1494 = vmatprep.subr.mxu0 0.0
    %1495 = vmatpush1.msra.mxu0 0.0
    %1496 = vmatprep.subr.mxu0 0.0
    %1497 = vmatpush1.msra.mxu0 0.0
    %1498 = vmatprep.subr.mxu0 0.0
    %1499 = vmatpush1.msra.mxu0 0.0
    %1500 = vmatprep.mubr.f32.mxu0 0.0
    %v1501 = vand.u32 %v1119, 4294901760
    %1502 = vmatmul.mubr.f32.gmra.mrb[0].mxu0 %v1501
    %v1503 = vpop.f32.mrb[0].mxu0
    %v1504 = vadd.f32 %v1427, %v1503
    %v1505 = vpop.f32.mrb[0].mxu0
    %1506 = vdwg.mxu0
    %1507 = vmatprep.subr.mxu0 0.0
    %v1508 = vand.u32 %v1107, 4294901760
    %1509 = vmatpush1.msra.mxu0 %v1508
    %1510 = vmatprep.subr.mxu0 0.0
    %v1511 = vand.u32 %v1108, 4294901760
    %1512 = vmatpush1.msra.mxu0 %v1511
    %1513 = vmatprep.subr.mxu0 0.0
    %1514 = vmatpush1.msra.mxu0 0.0
    %1515 = vmatprep.subr.mxu0 0.0
    %1516 = vmatpush1.msra.mxu0 0.0
    %1517 = vmatprep.subr.mxu0 0.0
    %1518 = vmatpush1.msra.mxu0 0.0
    %1519 = vmatprep.subr.mxu0 0.0
    %1520 = vmatpush1.msra.mxu0 0.0
    %1521 = vmatprep.subr.mxu0 0.0
    %1522 = vmatpush1.msra.mxu0 0.0
    %1523 = vmatprep.subr.mxu0 0.0
    %1524 = vmatpush1.msra.mxu0 0.0
    %1525 = vmatprep.subr.mxu0 0.0
    %1526 = vmatpush1.msra.mxu0 0.0
    %1527 = vmatprep.subr.mxu0 0.0
    %1528 = vmatpush1.msra.mxu0 0.0
    %1529 = vmatprep.subr.mxu0 0.0
    %1530 = vmatpush1.msra.mxu0 0.0
    %1531 = vmatprep.subr.mxu0 0.0
    %1532 = vmatpush1.msra.mxu0 0.0
    %1533 = vmatprep.subr.mxu0 0.0
    %1534 = vmatpush1.msra.mxu0 0.0
    %1535 = vmatprep.subr.mxu0 0.0
    %1536 = vmatpush1.msra.mxu0 0.0
    %1537 = vmatprep.subr.mxu0 0.0
    %1538 = vmatpush1.msra.mxu0 0.0
    %1539 = vmatprep.subr.mxu0 0.0
    %1540 = vmatpush1.msra.mxu0 0.0
    %1541 = vmatprep.subr.mxu0 0.0
    %1542 = vmatpush1.msra.mxu0 0.0
    %1543 = vmatprep.subr.mxu0 0.0
    %1544 = vmatpush1.msra.mxu0 0.0
    %1545 = vmatprep.subr.mxu0 0.0
    %1546 = vmatpush1.msra.mxu0 0.0
    %1547 = vmatprep.subr.mxu0 0.0
    %1548 = vmatpush1.msra.mxu0 0.0
    %1549 = vmatprep.subr.mxu0 0.0
    %1550 = vmatpush1.msra.mxu0 0.0
    %1551 = vmatprep.subr.mxu0 0.0
    %1552 = vmatpush1.msra.mxu0 0.0
    %1553 = vmatprep.subr.mxu0 0.0
    %1554 = vmatpush1.msra.mxu0 0.0
    %1555 = vmatprep.subr.mxu0 0.0
    %1556 = vmatpush1.msra.mxu0 0.0
    %1557 = vmatprep.subr.mxu0 0.0
    %1558 = vmatpush1.msra.mxu0 0.0
    %1559 = vmatprep.subr.mxu0 0.0
    %1560 = vmatpush1.msra.mxu0 0.0
    %1561 = vmatprep.subr.mxu0 0.0
    %1562 = vmatpush1.msra.mxu0 0.0
    %1563 = vmatprep.subr.mxu0 0.0
    %1564 = vmatpush1.msra.mxu0 0.0
    %1565 = vmatprep.subr.mxu0 0.0
    %1566 = vmatpush1.msra.mxu0 0.0
    %1567 = vmatprep.subr.mxu0 0.0
    %1568 = vmatpush1.msra.mxu0 0.0
    %1569 = vmatprep.subr.mxu0 0.0
    %1570 = vmatpush1.msra.mxu0 0.0
    %1571 = vmatprep.subr.mxu0 0.0
    %1572 = vmatpush1.msra.mxu0 0.0
    %1573 = vmatprep.mubr.f32.mxu0 0.0
    %v1574 = vand.u32 %v1119, 4294901760
    %1575 = vmatmul.mubr.f32.gmra.mrb[0].mxu0 %v1574
    %v1576 = vpop.f32.mrb[0].mxu0
    %v1577 = vadd.f32 %v1504, %v1576
    %v1578 = vpop.f32.mrb[0].mxu0
    %1579 = vdwg.mxu0
    %v1580 = vmax.f32 %v1577, 0.0
    %s1581 = scalar_lea.vmem [#allocation6], 192
    %v1582 = vld [vmem:[%s1581] sm:$0xff]
    %s1583 = scalar_lea.vmem %s2, 3
    %v1584 = vld [vmem:[%s1583] sm:$0x1]
    %v1586 = vlaneseq
    %v1587 = vshrl.u32 %v1586, 7
    %v1588 = vsub.s32 0, %v1587
    %v1589 = vrot.slane %v1584, %v1588
    %vm1591 = vcmask 64512
    %v1593 = vsel %vm1591, %v1580, 0
    %1595 = vmatprep.subr.mxu0 0.0
    %v1596 = vand.u32 %v1582, 4294901760
    %1597 = vmatpush1.msra.mxu0 %v1596
    %1598 = vmatprep.subr.mxu0 0.0
    %1599 = vmatpush1.msra.mxu0 0.0
    %1600 = vmatprep.subr.mxu0 0.0
    %1601 = vmatpush1.msra.mxu0 0.0
    %1602 = vmatprep.subr.mxu0 0.0
    %1603 = vmatpush1.msra.mxu0 0.0
    %1604 = vmatprep.subr.mxu0 0.0
    %1605 = vmatpush1.msra.mxu0 0.0
    %1606 = vmatprep.subr.mxu0 0.0
    %1607 = vmatpush1.msra.mxu0 0.0
    %1608 = vmatprep.subr.mxu0 0.0
    %1609 = vmatpush1.msra.mxu0 0.0
    %1610 = vmatprep.subr.mxu0 0.0
    %1611 = vmatpush1.msra.mxu0 0.0
    %1612 = vmatprep.subr.mxu0 0.0
    %1613 = vmatpush1.msra.mxu0 0.0
    %1614 = vmatprep.subr.mxu0 0.0
    %1615 = vmatpush1.msra.mxu0 0.0
    %1616 = vmatprep.subr.mxu0 0.0
    %1617 = vmatpush1.msra.mxu0 0.0
    %1618 = vmatprep.subr.mxu0 0.0
    %1619 = vmatpush1.msra.mxu0 0.0
    %1620 = vmatprep.subr.mxu0 0.0
    %1621 = vmatpush1.msra.mxu0 0.0
    %1622 = vmatprep.subr.mxu0 0.0
    %1623 = vmatpush1.msra.mxu0 0.0
    %1624 = vmatprep.subr.mxu0 0.0
    %1625 = vmatpush1.msra.mxu0 0.0
    %1626 = vmatprep.subr.mxu0 0.0
    %1627 = vmatpush1.msra.mxu0 0.0
    %1628 = vmatprep.subr.mxu0 0.0
    %1629 = vmatpush1.msra.mxu0 0.0
    %1630 = vmatprep.subr.mxu0 0.0
    %1631 = vmatpush1.msra.mxu0 0.0
    %1632 = vmatprep.subr.mxu0 0.0
    %1633 = vmatpush1.msra.mxu0 0.0
    %1634 = vmatprep.subr.mxu0 0.0
    %1635 = vmatpush1.msra.mxu0 0.0
    %1636 = vmatprep.subr.mxu0 0.0
    %1637 = vmatpush1.msra.mxu0 0.0
    %1638 = vmatprep.subr.mxu0 0.0
    %1639 = vmatpush1.msra.mxu0 0.0
    %1640 = vmatprep.subr.mxu0 0.0
    %1641 = vmatpush1.msra.mxu0 0.0
    %1642 = vmatprep.subr.mxu0 0.0
    %1643 = vmatpush1.msra.mxu0 0.0
    %1644 = vmatprep.subr.mxu0 0.0
    %1645 = vmatpush1.msra.mxu0 0.0
    %1646 = vmatprep.subr.mxu0 0.0
    %1647 = vmatpush1.msra.mxu0 0.0
    %1648 = vmatprep.subr.mxu0 0.0
    %1649 = vmatpush1.msra.mxu0 0.0
    %1650 = vmatprep.subr.mxu0 0.0
    %1651 = vmatpush1.msra.mxu0 0.0
    %1652 = vmatprep.subr.mxu0 0.0
    %1653 = vmatpush1.msra.mxu0 0.0
    %1654 = vmatprep.subr.mxu0 0.0
    %1655 = vmatpush1.msra.mxu0 0.0
    %1656 = vmatprep.subr.mxu0 0.0
    %1657 = vmatpush1.msra.mxu0 0.0
    %1658 = vmatprep.subr.mxu0 0.0
    %1659 = vmatpush1.msra.mxu0 0.0
    %1660 = vmatprep.mubr.f32.mxu0 0.0
    %v1661 = vand.u32 %v1593, 4294901760
    %v1662 = vsub.f32 %v1593, %v1661
    %v1663 = vand.u32 %v1662, 4294901760
    %v1664 = vsub.f32 %v1662, %v1663
    %v1665 = vand.u32 %v1664, 4294901760
    %1666 = vmatmul.mubr.f32.gmra.mrb[0].mxu0 %v1665
    %v1667 = vpop.f32.mrb[0].mxu0
    %v1668 = vadd.f32 %v1589, %v1667
    %v1669 = vpop.f32.mrb[0].mxu0
    %1670 = vdwg.mxu0
    %1671 = vmatprep.subr.mxu0 0.0
    %v1672 = vand.u32 %v1582, 4294901760
    %v1673 = vsub.f32 %v1582, %v1672
    %v1674 = vand.u32 %v1673, 4294901760
    %v1675 = vsub.f32 %v1673, %v1674
    %v1676 = vand.u32 %v1675, 4294901760
    %1677 = vmatpush1.msra.mxu0 %v1676
    %1678 = vmatprep.subr.mxu0 0.0
    %1679 = vmatpush1.msra.mxu0 0.0
    %1680 = vmatprep.subr.mxu0 0.0
    %1681 = vmatpush1.msra.mxu0 0.0
    %1682 = vmatprep.subr.mxu0 0.0
    %1683 = vmatpush1.msra.mxu0 0.0
    %1684 = vmatprep.subr.mxu0 0.0
    %1685 = vmatpush1.msra.mxu0 0.0
    %1686 = vmatprep.subr.mxu0 0.0
    %1687 = vmatpush1.msra.mxu0 0.0
    %1688 = vmatprep.subr.mxu0 0.0
    %1689 = vmatpush1.msra.mxu0 0.0
    %1690 = vmatprep.subr.mxu0 0.0
    %1691 = vmatpush1.msra.mxu0 0.0
    %1692 = vmatprep.subr.mxu0 0.0
    %1693 = vmatpush1.msra.mxu0 0.0
    %1694 = vmatprep.subr.mxu0 0.0
    %1695 = vmatpush1.msra.mxu0 0.0
    %1696 = vmatprep.subr.mxu0 0.0
    %1697 = vmatpush1.msra.mxu0 0.0
    %1698 = vmatprep.subr.mxu0 0.0
    %1699 = vmatpush1.msra.mxu0 0.0
    %1700 = vmatprep.subr.mxu0 0.0
    %1701 = vmatpush1.msra.mxu0 0.0
    %1702 = vmatprep.subr.mxu0 0.0
    %1703 = vmatpush1.msra.mxu0 0.0
    %1704 = vmatprep.subr.mxu0 0.0
    %1705 = vmatpush1.msra.mxu0 0.0
    %1706 = vmatprep.subr.mxu0 0.0
    %1707 = vmatpush1.msra.mxu0 0.0
    %1708 = vmatprep.subr.mxu0 0.0
    %1709 = vmatpush1.msra.mxu0 0.0
    %1710 = vmatprep.subr.mxu0 0.0
    %1711 = vmatpush1.msra.mxu0 0.0
    %1712 = vmatprep.subr.mxu0 0.0
    %1713 = vmatpush1.msra.mxu0 0.0
    %1714 = vmatprep.subr.mxu0 0.0
    %1715 = vmatpush1.msra.mxu0 0.0
    %1716 = vmatprep.subr.mxu0 0.0
    %1717 = vmatpush1.msra.mxu0 0.0
    %1718 = vmatprep.subr.mxu0 0.0
    %1719 = vmatpush1.msra.mxu0 0.0
    %1720 = vmatprep.subr.mxu0 0.0
    %1721 = vmatpush1.msra.mxu0 0.0
    %1722 = vmatprep.subr.mxu0 0.0
    %1723 = vmatpush1.msra.mxu0 0.0
    %1724 = vmatprep.subr.mxu0 0.0
    %1725 = vmatpush1.msra.mxu0 0.0
    %1726 = vmatprep.subr.mxu0 0.0
    %1727 = vmatpush1.msra.mxu0 0.0
    %1728 = vmatprep.subr.mxu0 0.0
    %1729 = vmatpush1.msra.mxu0 0.0
    %1730 = vmatprep.subr.mxu0 0.0
    %1731 = vmatpush1.msra.mxu0 0.0
    %1732 = vmatprep.subr.mxu0 0.0
    %1733 = vmatpush1.msra.mxu0 0.0
    %1734 = vmatprep.subr.mxu0 0.0
    %1735 = vmatpush1.msra.mxu0 0.0
    %1736 = vmatprep.subr.mxu0 0.0
    %1737 = vmatpush1.msra.mxu0 0.0
    %1738 = vmatprep.subr.mxu0 0.0
    %1739 = vmatpush1.msra.mxu0 0.0
    %1740 = vmatprep.mubr.f32.mxu0 0.0
    %v1741 = vand.u32 %v1593, 4294901760
    %1742 = vmatmul.mubr.f32.gmra.mrb[0].mxu0 %v1741
    %v1743 = vpop.f32.mrb[0].mxu0
    %v1744 = vadd.f32 %v1668, %v1743
    %v1745 = vpop.f32.mrb[0].mxu0
    %1746 = vdwg.mxu0
    %1747 = vmatprep.subr.mxu0 0.0
    %v1748 = vand.u32 %v1582, 4294901760
    %v1749 = vsub.f32 %v1582, %v1748
    %1750 = vmatpush1.msra.mxu0 %v1749
    %1751 = vmatprep.subr.mxu0 0.0
    %1752 = vmatpush1.msra.mxu0 0.0
    %1753 = vmatprep.subr.mxu0 0.0
    %1754 = vmatpush1.msra.mxu0 0.0
    %1755 = vmatprep.subr.mxu0 0.0
    %1756 = vmatpush1.msra.mxu0 0.0
    %1757 = vmatprep.subr.mxu0 0.0
    %1758 = vmatpush1.msra.mxu0 0.0
    %1759 = vmatprep.subr.mxu0 0.0
    %1760 = vmatpush1.msra.mxu0 0.0
    %1761 = vmatprep.subr.mxu0 0.0
    %1762 = vmatpush1.msra.mxu0 0.0
    %1763 = vmatprep.subr.mxu0 0.0
    %1764 = vmatpush1.msra.mxu0 0.0
    %1765 = vmatprep.subr.mxu0 0.0
    %1766 = vmatpush1.msra.mxu0 0.0
    %1767 = vmatprep.subr.mxu0 0.0
    %1768 = vmatpush1.msra.mxu0 0.0
    %1769 = vmatprep.subr.mxu0 0.0
    %1770 = vmatpush1.msra.mxu0 0.0
    %1771 = vmatprep.subr.mxu0 0.0
    %1772 = vmatpush1.msra.mxu0 0.0
    %1773 = vmatprep.subr.mxu0 0.0
    %1774 = vmatpush1.msra.mxu0 0.0
    %1775 = vmatprep.subr.mxu0 0.0
    %1776 = vmatpush1.msra.mxu0 0.0
    %1777 = vmatprep.subr.mxu0 0.0
    %1778 = vmatpush1.msra.mxu0 0.0
    %1779 = vmatprep.subr.mxu0 0.0
    %1780 = vmatpush1.msra.mxu0 0.0
    %1781 = vmatprep.subr.mxu0 0.0
    %1782 = vmatpush1.msra.mxu0 0.0
    %1783 = vmatprep.subr.mxu0 0.0
    %1784 = vmatpush1.msra.mxu0 0.0
    %1785 = vmatprep.subr.mxu0 0.0
    %1786 = vmatpush1.msra.mxu0 0.0
    %1787 = vmatprep.subr.mxu0 0.0
    %1788 = vmatpush1.msra.mxu0 0.0
    %1789 = vmatprep.subr.mxu0 0.0
    %1790 = vmatpush1.msra.mxu0 0.0
    %1791 = vmatprep.subr.mxu0 0.0
    %1792 = vmatpush1.msra.mxu0 0.0
    %1793 = vmatprep.subr.mxu0 0.0
    %1794 = vmatpush1.msra.mxu0 0.0
    %1795 = vmatprep.subr.mxu0 0.0
    %1796 = vmatpush1.msra.mxu0 0.0
    %1797 = vmatprep.subr.mxu0 0.0
    %1798 = vmatpush1.msra.mxu0 0.0
    %1799 = vmatprep.subr.mxu0 0.0
    %1800 = vmatpush1.msra.mxu0 0.0
    %1801 = vmatprep.subr.mxu0 0.0
    %1802 = vmatpush1.msra.mxu0 0.0
    %1803 = vmatprep.subr.mxu0 0.0
    %1804 = vmatpush1.msra.mxu0 0.0
    %1805 = vmatprep.subr.mxu0 0.0
    %1806 = vmatpush1.msra.mxu0 0.0
    %1807 = vmatprep.subr.mxu0 0.0
    %1808 = vmatpush1.msra.mxu0 0.0
    %1809 = vmatprep.subr.mxu0 0.0
    %1810 = vmatpush1.msra.mxu0 0.0
    %1811 = vmatprep.subr.mxu0 0.0
    %1812 = vmatpush1.msra.mxu0 0.0
    %1813 = vmatprep.mubr.f32.mxu0 0.0
    %v1814 = vand.u32 %v1593, 4294901760
    %v1815 = vsub.f32 %v1593, %v1814
    %1816 = vmatmul.mubr.f32.gmra.mrb[0].mxu0 %v1815
    %v1817 = vpop.f32.mrb[0].mxu0
    %v1818 = vadd.f32 %v1744, %v1817
    %v1819 = vpop.f32.mrb[0].mxu0
    %1820 = vdwg.mxu0
    %1821 = vmatprep.subr.mxu0 0.0
    %v1822 = vand.u32 %v1582, 4294901760
    %1823 = vmatpush1.msra.mxu0 %v1822
    %1824 = vmatprep.subr.mxu0 0.0
    %1825 = vmatpush1.msra.mxu0 0.0
    %1826 = vmatprep.subr.mxu0 0.0
    %1827 = vmatpush1.msra.mxu0 0.0
    %1828 = vmatprep.subr.mxu0 0.0
    %1829 = vmatpush1.msra.mxu0 0.0
    %1830 = vmatprep.subr.mxu0 0.0
    %1831 = vmatpush1.msra.mxu0 0.0
    %1832 = vmatprep.subr.mxu0 0.0
    %1833 = vmatpush1.msra.mxu0 0.0
    %1834 = vmatprep.subr.mxu0 0.0
    %1835 = vmatpush1.msra.mxu0 0.0
    %1836 = vmatprep.subr.mxu0 0.0
    %1837 = vmatpush1.msra.mxu0 0.0
    %1838 = vmatprep.subr.mxu0 0.0
    %1839 = vmatpush1.msra.mxu0 0.0
    %1840 = vmatprep.subr.mxu0 0.0
    %1841 = vmatpush1.msra.mxu0 0.0
    %1842 = vmatprep.subr.mxu0 0.0
    %1843 = vmatpush1.msra.mxu0 0.0
    %1844 = vmatprep.subr.mxu0 0.0
    %1845 = vmatpush1.msra.mxu0 0.0
    %1846 = vmatprep.subr.mxu0 0.0
    %1847 = vmatpush1.msra.mxu0 0.0
    %1848 = vmatprep.subr.mxu0 0.0
    %1849 = vmatpush1.msra.mxu0 0.0
    %1850 = vmatprep.subr.mxu0 0.0
    %1851 = vmatpush1.msra.mxu0 0.0
    %1852 = vmatprep.subr.mxu0 0.0
    %1853 = vmatpush1.msra.mxu0 0.0
    %1854 = vmatprep.subr.mxu0 0.0
    %1855 = vmatpush1.msra.mxu0 0.0
    %1856 = vmatprep.subr.mxu0 0.0
    %1857 = vmatpush1.msra.mxu0 0.0
    %1858 = vmatprep.subr.mxu0 0.0
    %1859 = vmatpush1.msra.mxu0 0.0
    %1860 = vmatprep.subr.mxu0 0.0
    %1861 = vmatpush1.msra.mxu0 0.0
    %1862 = vmatprep.subr.mxu0 0.0
    %1863 = vmatpush1.msra.mxu0 0.0
    %1864 = vmatprep.subr.mxu0 0.0
    %1865 = vmatpush1.msra.mxu0 0.0
    %1866 = vmatprep.subr.mxu0 0.0
    %1867 = vmatpush1.msra.mxu0 0.0
    %1868 = vmatprep.subr.mxu0 0.0
    %1869 = vmatpush1.msra.mxu0 0.0
    %1870 = vmatprep.subr.mxu0 0.0
    %1871 = vmatpush1.msra.mxu0 0.0
    %1872 = vmatprep.subr.mxu0 0.0
    %1873 = vmatpush1.msra.mxu0 0.0
    %1874 = vmatprep.subr.mxu0 0.0
    %1875 = vmatpush1.msra.mxu0 0.0
    %1876 = vmatprep.subr.mxu0 0.0
    %1877 = vmatpush1.msra.mxu0 0.0
    %1878 = vmatprep.subr.mxu0 0.0
    %1879 = vmatpush1.msra.mxu0 0.0
    %1880 = vmatprep.subr.mxu0 0.0
    %1881 = vmatpush1.msra.mxu0 0.0
    %1882 = vmatprep.subr.mxu0 0.0
    %1883 = vmatpush1.msra.mxu0 0.0
    %1884 = vmatprep.subr.mxu0 0.0
    %1885 = vmatpush1.msra.mxu0 0.0
    %1886 = vmatprep.mubr.f32.mxu0 0.0
    %v1887 = vand.u32 %v1593, 4294901760
    %v1888 = vsub.f32 %v1593, %v1887
    %v1889 = vand.u32 %v1888, 4294901760
    %1890 = vmatmul.mubr.f32.gmra.mrb[0].mxu0 %v1889
    %v1891 = vpop.f32.mrb[0].mxu0
    %v1892 = vadd.f32 %v1818, %v1891
    %v1893 = vpop.f32.mrb[0].mxu0
    %1894 = vdwg.mxu0
    %1895 = vmatprep.subr.mxu0 0.0
    %v1896 = vand.u32 %v1582, 4294901760
    %v1897 = vsub.f32 %v1582, %v1896
    %v1898 = vand.u32 %v1897, 4294901760
    %1899 = vmatpush1.msra.mxu0 %v1898
    %1900 = vmatprep.subr.mxu0 0.0
    %1901 = vmatpush1.msra.mxu0 0.0
    %1902 = vmatprep.subr.mxu0 0.0
    %1903 = vmatpush1.msra.mxu0 0.0
    %1904 = vmatprep.subr.mxu0 0.0
    %1905 = vmatpush1.msra.mxu0 0.0
    %1906 = vmatprep.subr.mxu0 0.0
    %1907 = vmatpush1.msra.mxu0 0.0
    %1908 = vmatprep.subr.mxu0 0.0
    %1909 = vmatpush1.msra.mxu0 0.0
    %1910 = vmatprep.subr.mxu0 0.0
    %1911 = vmatpush1.msra.mxu0 0.0
    %1912 = vmatprep.subr.mxu0 0.0
    %1913 = vmatpush1.msra.mxu0 0.0
    %1914 = vmatprep.subr.mxu0 0.0
    %1915 = vmatpush1.msra.mxu0 0.0
    %1916 = vmatprep.subr.mxu0 0.0
    %1917 = vmatpush1.msra.mxu0 0.0
    %1918 = vmatprep.subr.mxu0 0.0
    %1919 = vmatpush1.msra.mxu0 0.0
    %1920 = vmatprep.subr.mxu0 0.0
    %1921 = vmatpush1.msra.mxu0 0.0
    %1922 = vmatprep.subr.mxu0 0.0
    %1923 = vmatpush1.msra.mxu0 0.0
    %1924 = vmatprep.subr.mxu0 0.0
    %1925 = vmatpush1.msra.mxu0 0.0
    %1926 = vmatprep.subr.mxu0 0.0
    %1927 = vmatpush1.msra.mxu0 0.0
    %1928 = vmatprep.subr.mxu0 0.0
    %1929 = vmatpush1.msra.mxu0 0.0
    %1930 = vmatprep.subr.mxu0 0.0
    %1931 = vmatpush1.msra.mxu0 0.0
    %1932 = vmatprep.subr.mxu0 0.0
    %1933 = vmatpush1.msra.mxu0 0.0
    %1934 = vmatprep.subr.mxu0 0.0
    %1935 = vmatpush1.msra.mxu0 0.0
    %1936 = vmatprep.subr.mxu0 0.0
    %1937 = vmatpush1.msra.mxu0 0.0
    %1938 = vmatprep.subr.mxu0 0.0
    %1939 = vmatpush1.msra.mxu0 0.0
    %1940 = vmatprep.subr.mxu0 0.0
    %1941 = vmatpush1.msra.mxu0 0.0
    %1942 = vmatprep.subr.mxu0 0.0
    %1943 = vmatpush1.msra.mxu0 0.0
    %1944 = vmatprep.subr.mxu0 0.0
    %1945 = vmatpush1.msra.mxu0 0.0
    %1946 = vmatprep.subr.mxu0 0.0
    %1947 = vmatpush1.msra.mxu0 0.0
    %1948 = vmatprep.subr.mxu0 0.0
    %1949 = vmatpush1.msra.mxu0 0.0
    %1950 = vmatprep.subr.mxu0 0.0
    %1951 = vmatpush1.msra.mxu0 0.0
    %1952 = vmatprep.subr.mxu0 0.0
    %1953 = vmatpush1.msra.mxu0 0.0
    %1954 = vmatprep.subr.mxu0 0.0
    %1955 = vmatpush1.msra.mxu0 0.0
    %1956 = vmatprep.subr.mxu0 0.0
    %1957 = vmatpush1.msra.mxu0 0.0
    %1958 = vmatprep.subr.mxu0 0.0
    %1959 = vmatpush1.msra.mxu0 0.0
    %1960 = vmatprep.subr.mxu0 0.0
    %1961 = vmatpush1.msra.mxu0 0.0
    %1962 = vmatprep.mubr.f32.mxu0 0.0
    %v1963 = vand.u32 %v1593, 4294901760
    %1964 = vmatmul.mubr.f32.gmra.mrb[0].mxu0 %v1963
    %v1965 = vpop.f32.mrb[0].mxu0
    %v1966 = vadd.f32 %v1892, %v1965
    %v1967 = vpop.f32.mrb[0].mxu0
    %1968 = vdwg.mxu0
    %1969 = vmatprep.subr.mxu0 0.0
    %v1970 = vand.u32 %v1582, 4294901760
    %1971 = vmatpush1.msra.mxu0 %v1970
    %1972 = vmatprep.subr.mxu0 0.0
    %1973 = vmatpush1.msra.mxu0 0.0
    %1974 = vmatprep.subr.mxu0 0.0
    %1975 = vmatpush1.msra.mxu0 0.0
    %1976 = vmatprep.subr.mxu0 0.0
    %1977 = vmatpush1.msra.mxu0 0.0
    %1978 = vmatprep.subr.mxu0 0.0
    %1979 = vmatpush1.msra.mxu0 0.0
    %1980 = vmatprep.subr.mxu0 0.0
    %1981 = vmatpush1.msra.mxu0 0.0
    %1982 = vmatprep.subr.mxu0 0.0
    %1983 = vmatpush1.msra.mxu0 0.0
    %1984 = vmatprep.subr.mxu0 0.0
    %1985 = vmatpush1.msra.mxu0 0.0
    %1986 = vmatprep.subr.mxu0 0.0
    %1987 = vmatpush1.msra.mxu0 0.0
    %1988 = vmatprep.subr.mxu0 0.0
    %1989 = vmatpush1.msra.mxu0 0.0
    %1990 = vmatprep.subr.mxu0 0.0
    %1991 = vmatpush1.msra.mxu0 0.0
    %1992 = vmatprep.subr.mxu0 0.0
    %1993 = vmatpush1.msra.mxu0 0.0
    %1994 = vmatprep.subr.mxu0 0.0
    %1995 = vmatpush1.msra.mxu0 0.0
    %1996 = vmatprep.subr.mxu0 0.0
    %1997 = vmatpush1.msra.mxu0 0.0
    %1998 = vmatprep.subr.mxu0 0.0
    %1999 = vmatpush1.msra.mxu0 0.0
    %2000 = vmatprep.subr.mxu0 0.0
    %2001 = vmatpush1.msra.mxu0 0.0
    %2002 = vmatprep.subr.mxu0 0.0
    %2003 = vmatpush1.msra.mxu0 0.0
    %2004 = vmatprep.subr.mxu0 0.0
    %2005 = vmatpush1.msra.mxu0 0.0
    %2006 = vmatprep.subr.mxu0 0.0
    %2007 = vmatpush1.msra.mxu0 0.0
    %2008 = vmatprep.subr.mxu0 0.0
    %2009 = vmatpush1.msra.mxu0 0.0
    %2010 = vmatprep.subr.mxu0 0.0
    %2011 = vmatpush1.msra.mxu0 0.0
    %2012 = vmatprep.subr.mxu0 0.0
    %2013 = vmatpush1.msra.mxu0 0.0
    %2014 = vmatprep.subr.mxu0 0.0
    %2015 = vmatpush1.msra.mxu0 0.0
    %2016 = vmatprep.subr.mxu0 0.0
    %2017 = vmatpush1.msra.mxu0 0.0
    %2018 = vmatprep.subr.mxu0 0.0
    %2019 = vmatpush1.msra.mxu0 0.0
    %2020 = vmatprep.subr.mxu0 0.0
    %2021 = vmatpush1.msra.mxu0 0.0
    %2022 = vmatprep.subr.mxu0 0.0
    %2023 = vmatpush1.msra.mxu0 0.0
    %2024 = vmatprep.subr.mxu0 0.0
    %2025 = vmatpush1.msra.mxu0 0.0
    %2026 = vmatprep.subr.mxu0 0.0
    %2027 = vmatpush1.msra.mxu0 0.0
    %2028 = vmatprep.subr.mxu0 0.0
    %2029 = vmatpush1.msra.mxu0 0.0
    %2030 = vmatprep.subr.mxu0 0.0
    %2031 = vmatpush1.msra.mxu0 0.0
    %2032 = vmatprep.subr.mxu0 0.0
    %2033 = vmatpush1.msra.mxu0 0.0
    %2034 = vmatprep.mubr.f32.mxu0 0.0
    %v2035 = vand.u32 %v1593, 4294901760
    %2036 = vmatmul.mubr.f32.gmra.mrb[0].mxu0 %v2035
    %v2037 = vpop.f32.mrb[0].mxu0
    %v2038 = vadd.f32 %v1966, %v2037
    %v2039 = vpop.f32.mrb[0].mxu0
    %2040 = vdwg.mxu0
    %v2041 = vmax.f32 %v2038, 0.0
    %s2042 = scalar_lea.vmem [#allocation6], 256
    %v2043 = vld [vmem:[%s2042] sm:$0xff]
    %v2044 = vld [vmem:[%s2042 + $0x8] sm:$0xff]
    %s2045 = scalar_lea.vmem %s2, 4
    %v2046 = vld [vmem:[%s2045] sm:$0x1]
    %v2048 = vlaneseq
    %v2049 = vshrl.u32 %v2048, 7
    %v2050 = vsub.s32 0, %v2049
    %v2051 = vrot.slane %v2046, %v2050
    %v2054 = vsel %vm1117, %v2041, 0
    %2056 = vmatprep.subr.mxu0 0.0
    %v2057 = vand.u32 %v2043, 4294901760
    %2058 = vmatpush1.msra.mxu0 %v2057
    %2059 = vmatprep.subr.mxu0 0.0
    %v2060 = vand.u32 %v2044, 4294901760
    %2061 = vmatpush1.msra.mxu0 %v2060
    %2062 = vmatprep.subr.mxu0 0.0
    %2063 = vmatpush1.msra.mxu0 0.0
    %2064 = vmatprep.subr.mxu0 0.0
    %2065 = vmatpush1.msra.mxu0 0.0
    %2066 = vmatprep.subr.mxu0 0.0
    %2067 = vmatpush1.msra.mxu0 0.0
    %2068 = vmatprep.subr.mxu0 0.0
    %2069 = vmatpush1.msra.mxu0 0.0
    %2070 = vmatprep.subr.mxu0 0.0
    %2071 = vmatpush1.msra.mxu0 0.0
    %2072 = vmatprep.subr.mxu0 0.0
    %2073 = vmatpush1.msra.mxu0 0.0
    %2074 = vmatprep.subr.mxu0 0.0
    %2075 = vmatpush1.msra.mxu0 0.0
    %2076 = vmatprep.subr.mxu0 0.0
    %2077 = vmatpush1.msra.mxu0 0.0
    %2078 = vmatprep.subr.mxu0 0.0
    %2079 = vmatpush1.msra.mxu0 0.0
    %2080 = vmatprep.subr.mxu0 0.0
    %2081 = vmatpush1.msra.mxu0 0.0
    %2082 = vmatprep.subr.mxu0 0.0
    %2083 = vmatpush1.msra.mxu0 0.0
    %2084 = vmatprep.subr.mxu0 0.0
    %2085 = vmatpush1.msra.mxu0 0.0
    %2086 = vmatprep.subr.mxu0 0.0
    %2087 = vmatpush1.msra.mxu0 0.0
    %2088 = vmatprep.subr.mxu0 0.0
    %2089 = vmatpush1.msra.mxu0 0.0
    %2090 = vmatprep.subr.mxu0 0.0
    %2091 = vmatpush1.msra.mxu0 0.0
    %2092 = vmatprep.subr.mxu0 0.0
    %2093 = vmatpush1.msra.mxu0 0.0
    %2094 = vmatprep.subr.mxu0 0.0
    %2095 = vmatpush1.msra.mxu0 0.0
    %2096 = vmatprep.subr.mxu0 0.0
    %2097 = vmatpush1.msra.mxu0 0.0
    %2098 = vmatprep.subr.mxu0 0.0
    %2099 = vmatpush1.msra.mxu0 0.0
    %2100 = vmatprep.subr.mxu0 0.0
    %2101 = vmatpush1.msra.mxu0 0.0
    %2102 = vmatprep.subr.mxu0 0.0
    %2103 = vmatpush1.msra.mxu0 0.0
    %2104 = vmatprep.subr.mxu0 0.0
    %2105 = vmatpush1.msra.mxu0 0.0
    %2106 = vmatprep.subr.mxu0 0.0
    %2107 = vmatpush1.msra.mxu0 0.0
    %2108 = vmatprep.subr.mxu0 0.0
    %2109 = vmatpush1.msra.mxu0 0.0
    %2110 = vmatprep.subr.mxu0 0.0
    %2111 = vmatpush1.msra.mxu0 0.0
    %2112 = vmatprep.subr.mxu0 0.0
    %2113 = vmatpush1.msra.mxu0 0.0
    %2114 = vmatprep.subr.mxu0 0.0
    %2115 = vmatpush1.msra.mxu0 0.0
    %2116 = vmatprep.subr.mxu0 0.0
    %2117 = vmatpush1.msra.mxu0 0.0
    %2118 = vmatprep.subr.mxu0 0.0
    %2119 = vmatpush1.msra.mxu0 0.0
    %2120 = vmatprep.subr.mxu0 0.0
    %2121 = vmatpush1.msra.mxu0 0.0
    %2122 = vmatprep.mubr.f32.mxu0 0.0
    %v2123 = vand.u32 %v2054, 4294901760
    %v2124 = vsub.f32 %v2054, %v2123
    %v2125 = vand.u32 %v2124, 4294901760
    %v2126 = vsub.f32 %v2124, %v2125
    %v2127 = vand.u32 %v2126, 4294901760
    %2128 = vmatmul.mubr.f32.gmra.mrb[0].mxu0 %v2127
    %v2129 = vpop.f32.mrb[0].mxu0
    %v2130 = vadd.f32 %v2051, %v2129
    %v2131 = vpop.f32.mrb[0].mxu0
    %2132 = vdwg.mxu0
    %2133 = vmatprep.subr.mxu0 0.0
    %v2134 = vand.u32 %v2043, 4294901760
    %v2135 = vsub.f32 %v2043, %v2134
    %v2136 = vand.u32 %v2135, 4294901760
    %v2137 = vsub.f32 %v2135, %v2136
    %v2138 = vand.u32 %v2137, 4294901760
    %2139 = vmatpush1.msra.mxu0 %v2138
    %2140 = vmatprep.subr.mxu0 0.0
    %v2141 = vand.u32 %v2044, 4294901760
    %v2142 = vsub.f32 %v2044, %v2141
    %v2143 = vand.u32 %v2142, 4294901760
    %v2144 = vsub.f32 %v2142, %v2143
    %v2145 = vand.u32 %v2144, 4294901760
    %2146 = vmatpush1.msra.mxu0 %v2145
    %2147 = vmatprep.subr.mxu0 0.0
    %2148 = vmatpush1.msra.mxu0 0.0
    %2149 = vmatprep.subr.mxu0 0.0
    %2150 = vmatpush1.msra.mxu0 0.0
    %2151 = vmatprep.subr.mxu0 0.0
    %2152 = vmatpush1.msra.mxu0 0.0
    %2153 = vmatprep.subr.mxu0 0.0
    %2154 = vmatpush1.msra.mxu0 0.0
    %2155 = vmatprep.subr.mxu0 0.0
    %2156 = vmatpush1.msra.mxu0 0.0
    %2157 = vmatprep.subr.mxu0 0.0
    %2158 = vmatpush1.msra.mxu0 0.0
    %2159 = vmatprep.subr.mxu0 0.0
    %2160 = vmatpush1.msra.mxu0 0.0
    %2161 = vmatprep.subr.mxu0 0.0
    %2162 = vmatpush1.msra.mxu0 0.0
    %2163 = vmatprep.subr.mxu0 0.0
    %2164 = vmatpush1.msra.mxu0 0.0
    %2165 = vmatprep.subr.mxu0 0.0
    %2166 = vmatpush1.msra.mxu0 0.0
    %2167 = vmatprep.subr.mxu0 0.0
    %2168 = vmatpush1.msra.mxu0 0.0
    %2169 = vmatprep.subr.mxu0 0.0
    %2170 = vmatpush1.msra.mxu0 0.0
    %2171 = vmatprep.subr.mxu0 0.0
    %2172 = vmatpush1.msra.mxu0 0.0
    %2173 = vmatprep.subr.mxu0 0.0
    %2174 = vmatpush1.msra.mxu0 0.0
    %2175 = vmatprep.subr.mxu0 0.0
    %2176 = vmatpush1.msra.mxu0 0.0
    %2177 = vmatprep.subr.mxu0 0.0
    %2178 = vmatpush1.msra.mxu0 0.0
    %2179 = vmatprep.subr.mxu0 0.0
    %2180 = vmatpush1.msra.mxu0 0.0
    %2181 = vmatprep.subr.mxu0 0.0
    %2182 = vmatpush1.msra.mxu0 0.0
    %2183 = vmatprep.subr.mxu0 0.0
    %2184 = vmatpush1.msra.mxu0 0.0
    %2185 = vmatprep.subr.mxu0 0.0
    %2186 = vmatpush1.msra.mxu0 0.0
    %2187 = vmatprep.subr.mxu0 0.0
    %2188 = vmatpush1.msra.mxu0 0.0
    %2189 = vmatprep.subr.mxu0 0.0
    %2190 = vmatpush1.msra.mxu0 0.0
    %2191 = vmatprep.subr.mxu0 0.0
    %2192 = vmatpush1.msra.mxu0 0.0
    %2193 = vmatprep.subr.mxu0 0.0
    %2194 = vmatpush1.msra.mxu0 0.0
    %2195 = vmatprep.subr.mxu0 0.0
    %2196 = vmatpush1.msra.mxu0 0.0
    %2197 = vmatprep.subr.mxu0 0.0
    %2198 = vmatpush1.msra.mxu0 0.0
    %2199 = vmatprep.subr.mxu0 0.0
    %2200 = vmatpush1.msra.mxu0 0.0
    %2201 = vmatprep.subr.mxu0 0.0
    %2202 = vmatpush1.msra.mxu0 0.0
    %2203 = vmatprep.subr.mxu0 0.0
    %2204 = vmatpush1.msra.mxu0 0.0
    %2205 = vmatprep.subr.mxu0 0.0
    %2206 = vmatpush1.msra.mxu0 0.0
    %2207 = vmatprep.mubr.f32.mxu0 0.0
    %v2208 = vand.u32 %v2054, 4294901760
    %2209 = vmatmul.mubr.f32.gmra.mrb[0].mxu0 %v2208
    %v2210 = vpop.f32.mrb[0].mxu0
    %v2211 = vadd.f32 %v2130, %v2210
    %v2212 = vpop.f32.mrb[0].mxu0
    %2213 = vdwg.mxu0
    %2214 = vmatprep.subr.mxu0 0.0
    %v2215 = vand.u32 %v2043, 4294901760
    %v2216 = vsub.f32 %v2043, %v2215
    %2217 = vmatpush1.msra.mxu0 %v2216
    %2218 = vmatprep.subr.mxu0 0.0
    %v2219 = vand.u32 %v2044, 4294901760
    %v2220 = vsub.f32 %v2044, %v2219
    %2221 = vmatpush1.msra.mxu0 %v2220
    %2222 = vmatprep.subr.mxu0 0.0
    %2223 = vmatpush1.msra.mxu0 0.0
    %2224 = vmatprep.subr.mxu0 0.0
    %2225 = vmatpush1.msra.mxu0 0.0
    %2226 = vmatprep.subr.mxu0 0.0
    %2227 = vmatpush1.msra.mxu0 0.0
    %2228 = vmatprep.subr.mxu0 0.0
    %2229 = vmatpush1.msra.mxu0 0.0
    %2230 = vmatprep.subr.mxu0 0.0
    %2231 = vmatpush1.msra.mxu0 0.0
    %2232 = vmatprep.subr.mxu0 0.0
    %2233 = vmatpush1.msra.mxu0 0.0
    %2234 = vmatprep.subr.mxu0 0.0
    %2235 = vmatpush1.msra.mxu0 0.0
    %2236 = vmatprep.subr.mxu0 0.0
    %2237 = vmatpush1.msra.mxu0 0.0
    %2238 = vmatprep.subr.mxu0 0.0
    %2239 = vmatpush1.msra.mxu0 0.0
    %2240 = vmatprep.subr.mxu0 0.0
    %2241 = vmatpush1.msra.mxu0 0.0
    %2242 = vmatprep.subr.mxu0 0.0
    %2243 = vmatpush1.msra.mxu0 0.0
    %2244 = vmatprep.subr.mxu0 0.0
    %2245 = vmatpush1.msra.mxu0 0.0
    %2246 = vmatprep.subr.mxu0 0.0
    %2247 = vmatpush1.msra.mxu0 0.0
    %2248 = vmatprep.subr.mxu0 0.0
    %2249 = vmatpush1.msra.mxu0 0.0
    %2250 = vmatprep.subr.mxu0 0.0
    %2251 = vmatpush1.msra.mxu0 0.0
    %2252 = vmatprep.subr.mxu0 0.0
    %2253 = vmatpush1.msra.mxu0 0.0
    %2254 = vmatprep.subr.mxu0 0.0
    %2255 = vmatpush1.msra.mxu0 0.0
    %2256 = vmatprep.subr.mxu0 0.0
    %2257 = vmatpush1.msra.mxu0 0.0
    %2258 = vmatprep.subr.mxu0 0.0
    %2259 = vmatpush1.msra.mxu0 0.0
    %2260 = vmatprep.subr.mxu0 0.0
    %2261 = vmatpush1.msra.mxu0 0.0
    %2262 = vmatprep.subr.mxu0 0.0
    %2263 = vmatpush1.msra.mxu0 0.0
    %2264 = vmatprep.subr.mxu0 0.0
    %2265 = vmatpush1.msra.mxu0 0.0
    %2266 = vmatprep.subr.mxu0 0.0
    %2267 = vmatpush1.msra.mxu0 0.0
    %2268 = vmatprep.subr.mxu0 0.0
    %2269 = vmatpush1.msra.mxu0 0.0
    %2270 = vmatprep.subr.mxu0 0.0
    %2271 = vmatpush1.msra.mxu0 0.0
    %2272 = vmatprep.subr.mxu0 0.0
    %2273 = vmatpush1.msra.mxu0 0.0
    %2274 = vmatprep.subr.mxu0 0.0
    %2275 = vmatpush1.msra.mxu0 0.0
    %2276 = vmatprep.subr.mxu0 0.0
    %2277 = vmatpush1.msra.mxu0 0.0
    %2278 = vmatprep.subr.mxu0 0.0
    %2279 = vmatpush1.msra.mxu0 0.0
    %2280 = vmatprep.subr.mxu0 0.0
    %2281 = vmatpush1.msra.mxu0 0.0
    %2282 = vmatprep.mubr.f32.mxu0 0.0
    %v2283 = vand.u32 %v2054, 4294901760
    %v2284 = vsub.f32 %v2054, %v2283
    %2285 = vmatmul.mubr.f32.gmra.mrb[0].mxu0 %v2284
    %v2286 = vpop.f32.mrb[0].mxu0
    %v2287 = vadd.f32 %v2211, %v2286
    %v2288 = vpop.f32.mrb[0].mxu0
    %2289 = vdwg.mxu0
    %2290 = vmatprep.subr.mxu0 0.0
    %v2291 = vand.u32 %v2043, 4294901760
    %2292 = vmatpush1.msra.mxu0 %v2291
    %2293 = vmatprep.subr.mxu0 0.0
    %v2294 = vand.u32 %v2044, 4294901760
    %2295 = vmatpush1.msra.mxu0 %v2294
    %2296 = vmatprep.subr.mxu0 0.0
    %2297 = vmatpush1.msra.mxu0 0.0
    %2298 = vmatprep.subr.mxu0 0.0
    %2299 = vmatpush1.msra.mxu0 0.0
    %2300 = vmatprep.subr.mxu0 0.0
    %2301 = vmatpush1.msra.mxu0 0.0
    %2302 = vmatprep.subr.mxu0 0.0
    %2303 = vmatpush1.msra.mxu0 0.0
    %2304 = vmatprep.subr.mxu0 0.0
    %2305 = vmatpush1.msra.mxu0 0.0
    %2306 = vmatprep.subr.mxu0 0.0
    %2307 = vmatpush1.msra.mxu0 0.0
    %2308 = vmatprep.subr.mxu0 0.0
    %2309 = vmatpush1.msra.mxu0 0.0
    %2310 = vmatprep.subr.mxu0 0.0
    %2311 = vmatpush1.msra.mxu0 0.0
    %2312 = vmatprep.subr.mxu0 0.0
    %2313 = vmatpush1.msra.mxu0 0.0
    %2314 = vmatprep.subr.mxu0 0.0
    %2315 = vmatpush1.msra.mxu0 0.0
    %2316 = vmatprep.subr.mxu0 0.0
    %2317 = vmatpush1.msra.mxu0 0.0
    %2318 = vmatprep.subr.mxu0 0.0
    %2319 = vmatpush1.msra.mxu0 0.0
    %2320 = vmatprep.subr.mxu0 0.0
    %2321 = vmatpush1.msra.mxu0 0.0
    %2322 = vmatprep.subr.mxu0 0.0
    %2323 = vmatpush1.msra.mxu0 0.0
    %2324 = vmatprep.subr.mxu0 0.0
    %2325 = vmatpush1.msra.mxu0 0.0
    %2326 = vmatprep.subr.mxu0 0.0
    %2327 = vmatpush1.msra.mxu0 0.0
    %2328 = vmatprep.subr.mxu0 0.0
    %2329 = vmatpush1.msra.mxu0 0.0
    %2330 = vmatprep.subr.mxu0 0.0
    %2331 = vmatpush1.msra.mxu0 0.0
    %2332 = vmatprep.subr.mxu0 0.0
    %2333 = vmatpush1.msra.mxu0 0.0
    %2334 = vmatprep.subr.mxu0 0.0
    %2335 = vmatpush1.msra.mxu0 0.0
    %2336 = vmatprep.subr.mxu0 0.0
    %2337 = vmatpush1.msra.mxu0 0.0
    %2338 = vmatprep.subr.mxu0 0.0
    %2339 = vmatpush1.msra.mxu0 0.0
    %2340 = vmatprep.subr.mxu0 0.0
    %2341 = vmatpush1.msra.mxu0 0.0
    %2342 = vmatprep.subr.mxu0 0.0
    %2343 = vmatpush1.msra.mxu0 0.0
    %2344 = vmatprep.subr.mxu0 0.0
    %2345 = vmatpush1.msra.mxu0 0.0
    %2346 = vmatprep.subr.mxu0 0.0
    %2347 = vmatpush1.msra.mxu0 0.0
    %2348 = vmatprep.subr.mxu0 0.0
    %2349 = vmatpush1.msra.mxu0 0.0
    %2350 = vmatprep.subr.mxu0 0.0
    %2351 = vmatpush1.msra.mxu0 0.0
    %2352 = vmatprep.subr.mxu0 0.0
    %2353 = vmatpush1.msra.mxu0 0.0
    %2354 = vmatprep.subr.mxu0 0.0
    %2355 = vmatpush1.msra.mxu0 0.0
    %2356 = vmatprep.mubr.f32.mxu0 0.0
    %v2357 = vand.u32 %v2054, 4294901760
    %v2358 = vsub.f32 %v2054, %v2357
    %v2359 = vand.u32 %v2358, 4294901760
    %2360 = vmatmul.mubr.f32.gmra.mrb[0].mxu0 %v2359
    %v2361 = vpop.f32.mrb[0].mxu0
    %v2362 = vadd.f32 %v2287, %v2361
    %v2363 = vpop.f32.mrb[0].mxu0
    %2364 = vdwg.mxu0
    %2365 = vmatprep.subr.mxu0 0.0
    %v2366 = vand.u32 %v2043, 4294901760
    %v2367 = vsub.f32 %v2043, %v2366
    %v2368 = vand.u32 %v2367, 4294901760
    %2369 = vmatpush1.msra.mxu0 %v2368
    %2370 = vmatprep.subr.mxu0 0.0
    %v2371 = vand.u32 %v2044, 4294901760
    %v2372 = vsub.f32 %v2044, %v2371
    %v2373 = vand.u32 %v2372, 4294901760
    %2374 = vmatpush1.msra.mxu0 %v2373
    %2375 = vmatprep.subr.mxu0 0.0
    %2376 = vmatpush1.msra.mxu0 0.0
    %2377 = vmatprep.subr.mxu0 0.0
    %2378 = vmatpush1.msra.mxu0 0.0
    %2379 = vmatprep.subr.mxu0 0.0
    %2380 = vmatpush1.msra.mxu0 0.0
    %2381 = vmatprep.subr.mxu0 0.0
    %2382 = vmatpush1.msra.mxu0 0.0
    %2383 = vmatprep.subr.mxu0 0.0
    %2384 = vmatpush1.msra.mxu0 0.0
    %2385 = vmatprep.subr.mxu0 0.0
    %2386 = vmatpush1.msra.mxu0 0.0
    %2387 = vmatprep.subr.mxu0 0.0
    %2388 = vmatpush1.msra.mxu0 0.0
    %2389 = vmatprep.subr.mxu0 0.0
    %2390 = vmatpush1.msra.mxu0 0.0
    %2391 = vmatprep.subr.mxu0 0.0
    %2392 = vmatpush1.msra.mxu0 0.0
    %2393 = vmatprep.subr.mxu0 0.0
    %2394 = vmatpush1.msra.mxu0 0.0
    %2395 = vmatprep.subr.mxu0 0.0
    %2396 = vmatpush1.msra.mxu0 0.0
    %2397 = vmatprep.subr.mxu0 0.0
    %2398 = vmatpush1.msra.mxu0 0.0
    %2399 = vmatprep.subr.mxu0 0.0
    %2400 = vmatpush1.msra.mxu0 0.0
    %2401 = vmatprep.subr.mxu0 0.0
    %2402 = vmatpush1.msra.mxu0 0.0
    %2403 = vmatprep.subr.mxu0 0.0
    %2404 = vmatpush1.msra.mxu0 0.0
    %2405 = vmatprep.subr.mxu0 0.0
    %2406 = vmatpush1.msra.mxu0 0.0
    %2407 = vmatprep.subr.mxu0 0.0
    %2408 = vmatpush1.msra.mxu0 0.0
    %2409 = vmatprep.subr.mxu0 0.0
    %2410 = vmatpush1.msra.mxu0 0.0
    %2411 = vmatprep.subr.mxu0 0.0
    %2412 = vmatpush1.msra.mxu0 0.0
    %2413 = vmatprep.subr.mxu0 0.0
    %2414 = vmatpush1.msra.mxu0 0.0
    %2415 = vmatprep.subr.mxu0 0.0
    %2416 = vmatpush1.msra.mxu0 0.0
    %2417 = vmatprep.subr.mxu0 0.0
    %2418 = vmatpush1.msra.mxu0 0.0
    %2419 = vmatprep.subr.mxu0 0.0
    %2420 = vmatpush1.msra.mxu0 0.0
    %2421 = vmatprep.subr.mxu0 0.0
    %2422 = vmatpush1.msra.mxu0 0.0
    %2423 = vmatprep.subr.mxu0 0.0
    %2424 = vmatpush1.msra.mxu0 0.0
    %2425 = vmatprep.subr.mxu0 0.0
    %2426 = vmatpush1.msra.mxu0 0.0
    %2427 = vmatprep.subr.mxu0 0.0
    %2428 = vmatpush1.msra.mxu0 0.0
    %2429 = vmatprep.subr.mxu0 0.0
    %2430 = vmatpush1.msra.mxu0 0.0
    %2431 = vmatprep.subr.mxu0 0.0
    %2432 = vmatpush1.msra.mxu0 0.0
    %2433 = vmatprep.subr.mxu0 0.0
    %2434 = vmatpush1.msra.mxu0 0.0
    %2435 = vmatprep.mubr.f32.mxu0 0.0
    %v2436 = vand.u32 %v2054, 4294901760
    %2437 = vmatmul.mubr.f32.gmra.mrb[0].mxu0 %v2436
    %v2438 = vpop.f32.mrb[0].mxu0
    %v2439 = vadd.f32 %v2362, %v2438
    %v2440 = vpop.f32.mrb[0].mxu0
    %2441 = vdwg.mxu0
    %2442 = vmatprep.subr.mxu0 0.0
    %v2443 = vand.u32 %v2043, 4294901760
    %2444 = vmatpush1.msra.mxu0 %v2443
    %2445 = vmatprep.subr.mxu0 0.0
    %v2446 = vand.u32 %v2044, 4294901760
    %2447 = vmatpush1.msra.mxu0 %v2446
    %2448 = vmatprep.subr.mxu0 0.0
    %2449 = vmatpush1.msra.mxu0 0.0
    %2450 = vmatprep.subr.mxu0 0.0
    %2451 = vmatpush1.msra.mxu0 0.0
    %2452 = vmatprep.subr.mxu0 0.0
    %2453 = vmatpush1.msra.mxu0 0.0
    %2454 = vmatprep.subr.mxu0 0.0
    %2455 = vmatpush1.msra.mxu0 0.0
    %2456 = vmatprep.subr.mxu0 0.0
    %2457 = vmatpush1.msra.mxu0 0.0
    %2458 = vmatprep.subr.mxu0 0.0
    %2459 = vmatpush1.msra.mxu0 0.0
    %2460 = vmatprep.subr.mxu0 0.0
    %2461 = vmatpush1.msra.mxu0 0.0
    %2462 = vmatprep.subr.mxu0 0.0
    %2463 = vmatpush1.msra.mxu0 0.0
    %2464 = vmatprep.subr.mxu0 0.0
    %2465 = vmatpush1.msra.mxu0 0.0
    %2466 = vmatprep.subr.mxu0 0.0
    %2467 = vmatpush1.msra.mxu0 0.0
    %2468 = vmatprep.subr.mxu0 0.0
    %2469 = vmatpush1.msra.mxu0 0.0
    %2470 = vmatprep.subr.mxu0 0.0
    %2471 = vmatpush1.msra.mxu0 0.0
    %2472 = vmatprep.subr.mxu0 0.0
    %2473 = vmatpush1.msra.mxu0 0.0
    %2474 = vmatprep.subr.mxu0 0.0
    %2475 = vmatpush1.msra.mxu0 0.0
    %2476 = vmatprep.subr.mxu0 0.0
    %2477 = vmatpush1.msra.mxu0 0.0
    %2478 = vmatprep.subr.mxu0 0.0
    %2479 = vmatpush1.msra.mxu0 0.0
    %2480 = vmatprep.subr.mxu0 0.0
    %2481 = vmatpush1.msra.mxu0 0.0
    %2482 = vmatprep.subr.mxu0 0.0
    %2483 = vmatpush1.msra.mxu0 0.0
    %2484 = vmatprep.subr.mxu0 0.0
    %2485 = vmatpush1.msra.mxu0 0.0
    %2486 = vmatprep.subr.mxu0 0.0
    %2487 = vmatpush1.msra.mxu0 0.0
    %2488 = vmatprep.subr.mxu0 0.0
    %2489 = vmatpush1.msra.mxu0 0.0
    %2490 = vmatprep.subr.mxu0 0.0
    %2491 = vmatpush1.msra.mxu0 0.0
    %2492 = vmatprep.subr.mxu0 0.0
    %2493 = vmatpush1.msra.mxu0 0.0
    %2494 = vmatprep.subr.mxu0 0.0
    %2495 = vmatpush1.msra.mxu0 0.0
    %2496 = vmatprep.subr.mxu0 0.0
    %2497 = vmatpush1.msra.mxu0 0.0
    %2498 = vmatprep.subr.mxu0 0.0
    %2499 = vmatpush1.msra.mxu0 0.0
    %2500 = vmatprep.subr.mxu0 0.0
    %2501 = vmatpush1.msra.mxu0 0.0
    %2502 = vmatprep.subr.mxu0 0.0
    %2503 = vmatpush1.msra.mxu0 0.0
    %2504 = vmatprep.subr.mxu0 0.0
    %2505 = vmatpush1.msra.mxu0 0.0
    %2506 = vmatprep.subr.mxu0 0.0
    %2507 = vmatpush1.msra.mxu0 0.0
    %2508 = vmatprep.mubr.f32.mxu0 0.0
    %v2509 = vand.u32 %v2054, 4294901760
    %2510 = vmatmul.mubr.f32.gmra.mrb[0].mxu0 %v2509
    %v2511 = vpop.f32.mrb[0].mxu0
    %v2512 = vadd.f32 %v2439, %v2511
    %v2513 = vpop.f32.mrb[0].mxu0
    %2514 = vdwg.mxu0
    %v2515 = vmax.f32 %v2512, 0.0
    %s2516 = scalar_lea.vmem [#allocation6], 320
    %v2517 = vld [vmem:[%s2516] sm:$0xff]
    %v2518 = vld [vmem:[%s2516 + $0x8] sm:$0xff]
    %v2519 = vld [vmem:[%s2516 + $0x10] sm:$0xff]
    %v2520 = vld [vmem:[%s2516 + $0x18] sm:$0xff]
    %s2521 = scalar_lea.vmem %s2, 5
    %v2522 = vld [vmem:[%s2521] sm:$0x1]
    %v2524 = vlaneseq
    %v2525 = vshrl.u32 %v2524, 7
    %v2526 = vsub.s32 0, %v2525
    %v2527 = vrot.slane %v2522, %v2526
    %v2530 = vsel %vm616, %v2515, 0
    %2532 = vmatprep.subr.mxu0 0.0
    %v2533 = vand.u32 %v2517, 4294901760
    %2534 = vmatpush1.msra.mxu0 %v2533
    %2535 = vmatprep.subr.mxu0 0.0
    %v2536 = vand.u32 %v2518, 4294901760
    %2537 = vmatpush1.msra.mxu0 %v2536
    %2538 = vmatprep.subr.mxu0 0.0
    %v2539 = vand.u32 %v2519, 4294901760
    %2540 = vmatpush1.msra.mxu0 %v2539
    %2541 = vmatprep.subr.mxu0 0.0
    %v2542 = vand.u32 %v2520, 4294901760
    %2543 = vmatpush1.msra.mxu0 %v2542
    %2544 = vmatprep.subr.mxu0 0.0
    %2545 = vmatpush1.msra.mxu0 0.0
    %2546 = vmatprep.subr.mxu0 0.0
    %2547 = vmatpush1.msra.mxu0 0.0
    %2548 = vmatprep.subr.mxu0 0.0
    %2549 = vmatpush1.msra.mxu0 0.0
    %2550 = vmatprep.subr.mxu0 0.0
    %2551 = vmatpush1.msra.mxu0 0.0
    %2552 = vmatprep.subr.mxu0 0.0
    %2553 = vmatpush1.msra.mxu0 0.0
    %2554 = vmatprep.subr.mxu0 0.0
    %2555 = vmatpush1.msra.mxu0 0.0
    %2556 = vmatprep.subr.mxu0 0.0
    %2557 = vmatpush1.msra.mxu0 0.0
    %2558 = vmatprep.subr.mxu0 0.0
    %2559 = vmatpush1.msra.mxu0 0.0
    %2560 = vmatprep.subr.mxu0 0.0
    %2561 = vmatpush1.msra.mxu0 0.0
    %2562 = vmatprep.subr.mxu0 0.0
    %2563 = vmatpush1.msra.mxu0 0.0
    %2564 = vmatprep.subr.mxu0 0.0
    %2565 = vmatpush1.msra.mxu0 0.0
    %2566 = vmatprep.subr.mxu0 0.0
    %2567 = vmatpush1.msra.mxu0 0.0
    %2568 = vmatprep.subr.mxu0 0.0
    %2569 = vmatpush1.msra.mxu0 0.0
    %2570 = vmatprep.subr.mxu0 0.0
    %2571 = vmatpush1.msra.mxu0 0.0
    %2572 = vmatprep.subr.mxu0 0.0
    %2573 = vmatpush1.msra.mxu0 0.0
    %2574 = vmatprep.subr.mxu0 0.0
    %2575 = vmatpush1.msra.mxu0 0.0
    %2576 = vmatprep.subr.mxu0 0.0
    %2577 = vmatpush1.msra.mxu0 0.0
    %2578 = vmatprep.subr.mxu0 0.0
    %2579 = vmatpush1.msra.mxu0 0.0
    %2580 = vmatprep.subr.mxu0 0.0
    %2581 = vmatpush1.msra.mxu0 0.0
    %2582 = vmatprep.subr.mxu0 0.0
    %2583 = vmatpush1.msra.mxu0 0.0
    %2584 = vmatprep.subr.mxu0 0.0
    %2585 = vmatpush1.msra.mxu0 0.0
    %2586 = vmatprep.subr.mxu0 0.0
    %2587 = vmatpush1.msra.mxu0 0.0
    %2588 = vmatprep.subr.mxu0 0.0
    %2589 = vmatpush1.msra.mxu0 0.0
    %2590 = vmatprep.subr.mxu0 0.0
    %2591 = vmatpush1.msra.mxu0 0.0
    %2592 = vmatprep.subr.mxu0 0.0
    %2593 = vmatpush1.msra.mxu0 0.0
    %2594 = vmatprep.subr.mxu0 0.0
    %2595 = vmatpush1.msra.mxu0 0.0
    %2596 = vmatprep.subr.mxu0 0.0
    %2597 = vmatpush1.msra.mxu0 0.0
    %2598 = vmatprep.subr.mxu0 0.0
    %2599 = vmatpush1.msra.mxu0 0.0
    %2600 = vmatprep.mubr.f32.mxu0 0.0
    %v2601 = vand.u32 %v2530, 4294901760
    %v2602 = vsub.f32 %v2530, %v2601
    %v2603 = vand.u32 %v2602, 4294901760
    %v2604 = vsub.f32 %v2602, %v2603
    %v2605 = vand.u32 %v2604, 4294901760
    %2606 = vmatmul.mubr.f32.gmra.mrb[0].mxu0 %v2605
    %v2607 = vpop.f32.mrb[0].mxu0
    %v2608 = vadd.f32 %v2527, %v2607
    %v2609 = vpop.f32.mrb[0].mxu0
    %2610 = vdwg.mxu0
    %2611 = vmatprep.subr.mxu0 0.0
    %v2612 = vand.u32 %v2517, 4294901760
    %v2613 = vsub.f32 %v2517, %v2612
    %v2614 = vand.u32 %v2613, 4294901760
    %v2615 = vsub.f32 %v2613, %v2614
    %v2616 = vand.u32 %v2615, 4294901760
    %2617 = vmatpush1.msra.mxu0 %v2616
    %2618 = vmatprep.subr.mxu0 0.0
    %v2619 = vand.u32 %v2518, 4294901760
    %v2620 = vsub.f32 %v2518, %v2619
    %v2621 = vand.u32 %v2620, 4294901760
    %v2622 = vsub.f32 %v2620, %v2621
    %v2623 = vand.u32 %v2622, 4294901760
    %2624 = vmatpush1.msra.mxu0 %v2623
    %2625 = vmatprep.subr.mxu0 0.0
    %v2626 = vand.u32 %v2519, 4294901760
    %v2627 = vsub.f32 %v2519, %v2626
    %v2628 = vand.u32 %v2627, 4294901760
    %v2629 = vsub.f32 %v2627, %v2628
    %v2630 = vand.u32 %v2629, 4294901760
    %2631 = vmatpush1.msra.mxu0 %v2630
    %2632 = vmatprep.subr.mxu0 0.0
    %v2633 = vand.u32 %v2520, 4294901760
    %v2634 = vsub.f32 %v2520, %v2633
    %v2635 = vand.u32 %v2634, 4294901760
    %v2636 = vsub.f32 %v2634, %v2635
    %v2637 = vand.u32 %v2636, 4294901760
    %2638 = vmatpush1.msra.mxu0 %v2637
    %2639 = vmatprep.subr.mxu0 0.0
    %2640 = vmatpush1.msra.mxu0 0.0
    %2641 = vmatprep.subr.mxu0 0.0
    %2642 = vmatpush1.msra.mxu0 0.0
    %2643 = vmatprep.subr.mxu0 0.0
    %2644 = vmatpush1.msra.mxu0 0.0
    %2645 = vmatprep.subr.mxu0 0.0
    %2646 = vmatpush1.msra.mxu0 0.0
    %2647 = vmatprep.subr.mxu0 0.0
    %2648 = vmatpush1.msra.mxu0 0.0
    %2649 = vmatprep.subr.mxu0 0.0
    %2650 = vmatpush1.msra.mxu0 0.0
    %2651 = vmatprep.subr.mxu0 0.0
    %2652 = vmatpush1.msra.mxu0 0.0
    %2653 = vmatprep.subr.mxu0 0.0
    %2654 = vmatpush1.msra.mxu0 0.0
    %2655 = vmatprep.subr.mxu0 0.0
    %2656 = vmatpush1.msra.mxu0 0.0
    %2657 = vmatprep.subr.mxu0 0.0
    %2658 = vmatpush1.msra.mxu0 0.0
    %2659 = vmatprep.subr.mxu0 0.0
    %2660 = vmatpush1.msra.mxu0 0.0
    %2661 = vmatprep.subr.mxu0 0.0
    %2662 = vmatpush1.msra.mxu0 0.0
    %2663 = vmatprep.subr.mxu0 0.0
    %2664 = vmatpush1.msra.mxu0 0.0
    %2665 = vmatprep.subr.mxu0 0.0
    %2666 = vmatpush1.msra.mxu0 0.0
    %2667 = vmatprep.subr.mxu0 0.0
    %2668 = vmatpush1.msra.mxu0 0.0
    %2669 = vmatprep.subr.mxu0 0.0
    %2670 = vmatpush1.msra.mxu0 0.0
    %2671 = vmatprep.subr.mxu0 0.0
    %2672 = vmatpush1.msra.mxu0 0.0
    %2673 = vmatprep.subr.mxu0 0.0
    %2674 = vmatpush1.msra.mxu0 0.0
    %2675 = vmatprep.subr.mxu0 0.0
    %2676 = vmatpush1.msra.mxu0 0.0
    %2677 = vmatprep.subr.mxu0 0.0
    %2678 = vmatpush1.msra.mxu0 0.0
    %2679 = vmatprep.subr.mxu0 0.0
    %2680 = vmatpush1.msra.mxu0 0.0
    %2681 = vmatprep.subr.mxu0 0.0
    %2682 = vmatpush1.msra.mxu0 0.0
    %2683 = vmatprep.subr.mxu0 0.0
    %2684 = vmatpush1.msra.mxu0 0.0
    %2685 = vmatprep.subr.mxu0 0.0
    %2686 = vmatpush1.msra.mxu0 0.0
    %2687 = vmatprep.subr.mxu0 0.0
    %2688 = vmatpush1.msra.mxu0 0.0
    %2689 = vmatprep.subr.mxu0 0.0
    %2690 = vmatpush1.msra.mxu0 0.0
    %2691 = vmatprep.subr.mxu0 0.0
    %2692 = vmatpush1.msra.mxu0 0.0
    %2693 = vmatprep.subr.mxu0 0.0
    %2694 = vmatpush1.msra.mxu0 0.0
    %2695 = vmatprep.mubr.f32.mxu0 0.0
    %v2696 = vand.u32 %v2530, 4294901760
    %2697 = vmatmul.mubr.f32.gmra.mrb[0].mxu0 %v2696
    %v2698 = vpop.f32.mrb[0].mxu0
    %v2699 = vadd.f32 %v2608, %v2698
    %v2700 = vpop.f32.mrb[0].mxu0
    %2701 = vdwg.mxu0
    %2702 = vmatprep.subr.mxu0 0.0
    %v2703 = vand.u32 %v2517, 4294901760
    %v2704 = vsub.f32 %v2517, %v2703
    %2705 = vmatpush1.msra.mxu0 %v2704
    %2706 = vmatprep.subr.mxu0 0.0
    %v2707 = vand.u32 %v2518, 4294901760
    %v2708 = vsub.f32 %v2518, %v2707
    %2709 = vmatpush1.msra.mxu0 %v2708
    %2710 = vmatprep.subr.mxu0 0.0
    %v2711 = vand.u32 %v2519, 4294901760
    %v2712 = vsub.f32 %v2519, %v2711
    %2713 = vmatpush1.msra.mxu0 %v2712
    %2714 = vmatprep.subr.mxu0 0.0
    %v2715 = vand.u32 %v2520, 4294901760
    %v2716 = vsub.f32 %v2520, %v2715
    %2717 = vmatpush1.msra.mxu0 %v2716
    %2718 = vmatprep.subr.mxu0 0.0
    %2719 = vmatpush1.msra.mxu0 0.0
    %2720 = vmatprep.subr.mxu0 0.0
    %2721 = vmatpush1.msra.mxu0 0.0
    %2722 = vmatprep.subr.mxu0 0.0
    %2723 = vmatpush1.msra.mxu0 0.0
    %2724 = vmatprep.subr.mxu0 0.0
    %2725 = vmatpush1.msra.mxu0 0.0
    %2726 = vmatprep.subr.mxu0 0.0
    %2727 = vmatpush1.msra.mxu0 0.0
    %2728 = vmatprep.subr.mxu0 0.0
    %2729 = vmatpush1.msra.mxu0 0.0
    %2730 = vmatprep.subr.mxu0 0.0
    %2731 = vmatpush1.msra.mxu0 0.0
    %2732 = vmatprep.subr.mxu0 0.0
    %2733 = vmatpush1.msra.mxu0 0.0
    %2734 = vmatprep.subr.mxu0 0.0
    %2735 = vmatpush1.msra.mxu0 0.0
    %2736 = vmatprep.subr.mxu0 0.0
    %2737 = vmatpush1.msra.mxu0 0.0
    %2738 = vmatprep.subr.mxu0 0.0
    %2739 = vmatpush1.msra.mxu0 0.0
    %2740 = vmatprep.subr.mxu0 0.0
    %2741 = vmatpush1.msra.mxu0 0.0
    %2742 = vmatprep.subr.mxu0 0.0
    %2743 = vmatpush1.msra.mxu0 0.0
    %2744 = vmatprep.subr.mxu0 0.0
    %2745 = vmatpush1.msra.mxu0 0.0
    %2746 = vmatprep.subr.mxu0 0.0
    %2747 = vmatpush1.msra.mxu0 0.0
    %2748 = vmatprep.subr.mxu0 0.0
    %2749 = vmatpush1.msra.mxu0 0.0
    %2750 = vmatprep.subr.mxu0 0.0
    %2751 = vmatpush1.msra.mxu0 0.0
    %2752 = vmatprep.subr.mxu0 0.0
    %2753 = vmatpush1.msra.mxu0 0.0
    %2754 = vmatprep.subr.mxu0 0.0
    %2755 = vmatpush1.msra.mxu0 0.0
    %2756 = vmatprep.subr.mxu0 0.0
    %2757 = vmatpush1.msra.mxu0 0.0
    %2758 = vmatprep.subr.mxu0 0.0
    %2759 = vmatpush1.msra.mxu0 0.0
    %2760 = vmatprep.subr.mxu0 0.0
    %2761 = vmatpush1.msra.mxu0 0.0
    %2762 = vmatprep.subr.mxu0 0.0
    %2763 = vmatpush1.msra.mxu0 0.0
    %2764 = vmatprep.subr.mxu0 0.0
    %2765 = vmatpush1.msra.mxu0 0.0
    %2766 = vmatprep.subr.mxu0 0.0
    %2767 = vmatpush1.msra.mxu0 0.0
    %2768 = vmatprep.subr.mxu0 0.0
    %2769 = vmatpush1.msra.mxu0 0.0
    %2770 = vmatprep.subr.mxu0 0.0
    %2771 = vmatpush1.msra.mxu0 0.0
    %2772 = vmatprep.subr.mxu0 0.0
    %2773 = vmatpush1.msra.mxu0 0.0
    %2774 = vmatprep.mubr.f32.mxu0 0.0
    %v2775 = vand.u32 %v2530, 4294901760
    %v2776 = vsub.f32 %v2530, %v2775
    %2777 = vmatmul.mubr.f32.gmra.mrb[0].mxu0 %v2776
    %v2778 = vpop.f32.mrb[0].mxu0
    %v2779 = vadd.f32 %v2699, %v2778
    %v2780 = vpop.f32.mrb[0].mxu0
    %2781 = vdwg.mxu0
    %2782 = vmatprep.subr.mxu0 0.0
    %v2783 = vand.u32 %v2517, 4294901760
    %2784 = vmatpush1.msra.mxu0 %v2783
    %2785 = vmatprep.subr.mxu0 0.0
    %v2786 = vand.u32 %v2518, 4294901760
    %2787 = vmatpush1.msra.mxu0 %v2786
    %2788 = vmatprep.subr.mxu0 0.0
    %v2789 = vand.u32 %v2519, 4294901760
    %2790 = vmatpush1.msra.mxu0 %v2789
    %2791 = vmatprep.subr.mxu0 0.0
    %v2792 = vand.u32 %v2520, 4294901760
    %2793 = vmatpush1.msra.mxu0 %v2792
    %2794 = vmatprep.subr.mxu0 0.0
    %2795 = vmatpush1.msra.mxu0 0.0
    %2796 = vmatprep.subr.mxu0 0.0
    %2797 = vmatpush1.msra.mxu0 0.0
    %2798 = vmatprep.subr.mxu0 0.0
    %2799 = vmatpush1.msra.mxu0 0.0
    %2800 = vmatprep.subr.mxu0 0.0
    %2801 = vmatpush1.msra.mxu0 0.0
    %2802 = vmatprep.subr.mxu0 0.0
    %2803 = vmatpush1.msra.mxu0 0.0
    %2804 = vmatprep.subr.mxu0 0.0
    %2805 = vmatpush1.msra.mxu0 0.0
    %2806 = vmatprep.subr.mxu0 0.0
    %2807 = vmatpush1.msra.mxu0 0.0
    %2808 = vmatprep.subr.mxu0 0.0
    %2809 = vmatpush1.msra.mxu0 0.0
    %2810 = vmatprep.subr.mxu0 0.0
    %2811 = vmatpush1.msra.mxu0 0.0
    %2812 = vmatprep.subr.mxu0 0.0
    %2813 = vmatpush1.msra.mxu0 0.0
    %2814 = vmatprep.subr.mxu0 0.0
    %2815 = vmatpush1.msra.mxu0 0.0
    %2816 = vmatprep.subr.mxu0 0.0
    %2817 = vmatpush1.msra.mxu0 0.0
    %2818 = vmatprep.subr.mxu0 0.0
    %2819 = vmatpush1.msra.mxu0 0.0
    %2820 = vmatprep.subr.mxu0 0.0
    %2821 = vmatpush1.msra.mxu0 0.0
    %2822 = vmatprep.subr.mxu0 0.0
    %2823 = vmatpush1.msra.mxu0 0.0
    %2824 = vmatprep.subr.mxu0 0.0
    %2825 = vmatpush1.msra.mxu0 0.0
    %2826 = vmatprep.subr.mxu0 0.0
    %2827 = vmatpush1.msra.mxu0 0.0
    %2828 = vmatprep.subr.mxu0 0.0
    %2829 = vmatpush1.msra.mxu0 0.0
    %2830 = vmatprep.subr.mxu0 0.0
    %2831 = vmatpush1.msra.mxu0 0.0
    %2832 = vmatprep.subr.mxu0 0.0
    %2833 = vmatpush1.msra.mxu0 0.0
    %2834 = vmatprep.subr.mxu0 0.0
    %2835 = vmatpush1.msra.mxu0 0.0
    %2836 = vmatprep.subr.mxu0 0.0
    %2837 = vmatpush1.msra.mxu0 0.0
    %2838 = vmatprep.subr.mxu0 0.0
    %2839 = vmatpush1.msra.mxu0 0.0
    %2840 = vmatprep.subr.mxu0 0.0
    %2841 = vmatpush1.msra.mxu0 0.0
    %2842 = vmatprep.subr.mxu0 0.0
    %2843 = vmatpush1.msra.mxu0 0.0
    %2844 = vmatprep.subr.mxu0 0.0
    %2845 = vmatpush1.msra.mxu0 0.0
    %2846 = vmatprep.subr.mxu0 0.0
    %2847 = vmatpush1.msra.mxu0 0.0
    %2848 = vmatprep.subr.mxu0 0.0
    %2849 = vmatpush1.msra.mxu0 0.0
    %2850 = vmatprep.mubr.f32.mxu0 0.0
    %v2851 = vand.u32 %v2530, 4294901760
    %v2852 = vsub.f32 %v2530, %v2851
    %v2853 = vand.u32 %v2852, 4294901760
    %2854 = vmatmul.mubr.f32.gmra.mrb[0].mxu0 %v2853
    %v2855 = vpop.f32.mrb[0].mxu0
    %v2856 = vadd.f32 %v2779, %v2855
    %v2857 = vpop.f32.mrb[0].mxu0
    %2858 = vdwg.mxu0
    %2859 = vmatprep.subr.mxu0 0.0
    %v2860 = vand.u32 %v2517, 4294901760
    %v2861 = vsub.f32 %v2517, %v2860
    %v2862 = vand.u32 %v2861, 4294901760
    %2863 = vmatpush1.msra.mxu0 %v2862
    %2864 = vmatprep.subr.mxu0 0.0
    %v2865 = vand.u32 %v2518, 4294901760
    %v2866 = vsub.f32 %v2518, %v2865
    %v2867 = vand.u32 %v2866, 4294901760
    %2868 = vmatpush1.msra.mxu0 %v2867
    %2869 = vmatprep.subr.mxu0 0.0
    %v2870 = vand.u32 %v2519, 4294901760
    %v2871 = vsub.f32 %v2519, %v2870
    %v2872 = vand.u32 %v2871, 4294901760
    %2873 = vmatpush1.msra.mxu0 %v2872
    %2874 = vmatprep.subr.mxu0 0.0
    %v2875 = vand.u32 %v2520, 4294901760
    %v2876 = vsub.f32 %v2520, %v2875
    %v2877 = vand.u32 %v2876, 4294901760
    %2878 = vmatpush1.msra.mxu0 %v2877
    %2879 = vmatprep.subr.mxu0 0.0
    %2880 = vmatpush1.msra.mxu0 0.0
    %2881 = vmatprep.subr.mxu0 0.0
    %2882 = vmatpush1.msra.mxu0 0.0
    %2883 = vmatprep.subr.mxu0 0.0
    %2884 = vmatpush1.msra.mxu0 0.0
    %2885 = vmatprep.subr.mxu0 0.0
    %2886 = vmatpush1.msra.mxu0 0.0
    %2887 = vmatprep.subr.mxu0 0.0
    %2888 = vmatpush1.msra.mxu0 0.0
    %2889 = vmatprep.subr.mxu0 0.0
    %2890 = vmatpush1.msra.mxu0 0.0
    %2891 = vmatprep.subr.mxu0 0.0
    %2892 = vmatpush1.msra.mxu0 0.0
    %2893 = vmatprep.subr.mxu0 0.0
    %2894 = vmatpush1.msra.mxu0 0.0
    %2895 = vmatprep.subr.mxu0 0.0
    %2896 = vmatpush1.msra.mxu0 0.0
    %2897 = vmatprep.subr.mxu0 0.0
    %2898 = vmatpush1.msra.mxu0 0.0
    %2899 = vmatprep.subr.mxu0 0.0
    %2900 = vmatpush1.msra.mxu0 0.0
    %2901 = vmatprep.subr.mxu0 0.0
    %2902 = vmatpush1.msra.mxu0 0.0
    %2903 = vmatprep.subr.mxu0 0.0
    %2904 = vmatpush1.msra.mxu0 0.0
    %2905 = vmatprep.subr.mxu0 0.0
    %2906 = vmatpush1.msra.mxu0 0.0
    %2907 = vmatprep.subr.mxu0 0.0
    %2908 = vmatpush1.msra.mxu0 0.0
    %2909 = vmatprep.subr.mxu0 0.0
    %2910 = vmatpush1.msra.mxu0 0.0
    %2911 = vmatprep.subr.mxu0 0.0
    %2912 = vmatpush1.msra.mxu0 0.0
    %2913 = vmatprep.subr.mxu0 0.0
    %2914 = vmatpush1.msra.mxu0 0.0
    %2915 = vmatprep.subr.mxu0 0.0
    %2916 = vmatpush1.msra.mxu0 0.0
    %2917 = vmatprep.subr.mxu0 0.0
    %2918 = vmatpush1.msra.mxu0 0.0
    %2919 = vmatprep.subr.mxu0 0.0
    %2920 = vmatpush1.msra.mxu0 0.0
    %2921 = vmatprep.subr.mxu0 0.0
    %2922 = vmatpush1.msra.mxu0 0.0
    %2923 = vmatprep.subr.mxu0 0.0
    %2924 = vmatpush1.msra.mxu0 0.0
    %2925 = vmatprep.subr.mxu0 0.0
    %2926 = vmatpush1.msra.mxu0 0.0
    %2927 = vmatprep.subr.mxu0 0.0
    %2928 = vmatpush1.msra.mxu0 0.0
    %2929 = vmatprep.subr.mxu0 0.0
    %2930 = vmatpush1.msra.mxu0 0.0
    %2931 = vmatprep.subr.mxu0 0.0
    %2932 = vmatpush1.msra.mxu0 0.0
    %2933 = vmatprep.subr.mxu0 0.0
    %2934 = vmatpush1.msra.mxu0 0.0
    %2935 = vmatprep.mubr.f32.mxu0 0.0
    %v2936 = vand.u32 %v2530, 4294901760
    %2937 = vmatmul.mubr.f32.gmra.mrb[0].mxu0 %v2936
    %v2938 = vpop.f32.mrb[0].mxu0
    %v2939 = vadd.f32 %v2856, %v2938
    %v2940 = vpop.f32.mrb[0].mxu0
    %2941 = vdwg.mxu0
    %2942 = vmatprep.subr.mxu0 0.0
    %v2943 = vand.u32 %v2517, 4294901760
    %2944 = vmatpush1.msra.mxu0 %v2943
    %2945 = vmatprep.subr.mxu0 0.0
    %v2946 = vand.u32 %v2518, 4294901760
    %2947 = vmatpush1.msra.mxu0 %v2946
    %2948 = vmatprep.subr.mxu0 0.0
    %v2949 = vand.u32 %v2519, 4294901760
    %2950 = vmatpush1.msra.mxu0 %v2949
    %2951 = vmatprep.subr.mxu0 0.0
    %v2952 = vand.u32 %v2520, 4294901760
    %2953 = vmatpush1.msra.mxu0 %v2952
    %2954 = vmatprep.subr.mxu0 0.0
    %2955 = vmatpush1.msra.mxu0 0.0
    %2956 = vmatprep.subr.mxu0 0.0
    %2957 = vmatpush1.msra.mxu0 0.0
    %2958 = vmatprep.subr.mxu0 0.0
    %2959 = vmatpush1.msra.mxu0 0.0
    %2960 = vmatprep.subr.mxu0 0.0
    %2961 = vmatpush1.msra.mxu0 0.0
    %2962 = vmatprep.subr.mxu0 0.0
    %2963 = vmatpush1.msra.mxu0 0.0
    %2964 = vmatprep.subr.mxu0 0.0
    %2965 = vmatpush1.msra.mxu0 0.0
    %2966 = vmatprep.subr.mxu0 0.0
    %2967 = vmatpush1.msra.mxu0 0.0
    %2968 = vmatprep.subr.mxu0 0.0
    %2969 = vmatpush1.msra.mxu0 0.0
    %2970 = vmatprep.subr.mxu0 0.0
    %2971 = vmatpush1.msra.mxu0 0.0
    %2972 = vmatprep.subr.mxu0 0.0
    %2973 = vmatpush1.msra.mxu0 0.0
    %2974 = vmatprep.subr.mxu0 0.0
    %2975 = vmatpush1.msra.mxu0 0.0
    %2976 = vmatprep.subr.mxu0 0.0
    %2977 = vmatpush1.msra.mxu0 0.0
    %2978 = vmatprep.subr.mxu0 0.0
    %2979 = vmatpush1.msra.mxu0 0.0
    %2980 = vmatprep.subr.mxu0 0.0
    %2981 = vmatpush1.msra.mxu0 0.0
    %2982 = vmatprep.subr.mxu0 0.0
    %2983 = vmatpush1.msra.mxu0 0.0
    %2984 = vmatprep.subr.mxu0 0.0
    %2985 = vmatpush1.msra.mxu0 0.0
    %2986 = vmatprep.subr.mxu0 0.0
    %2987 = vmatpush1.msra.mxu0 0.0
    %2988 = vmatprep.subr.mxu0 0.0
    %2989 = vmatpush1.msra.mxu0 0.0
    %2990 = vmatprep.subr.mxu0 0.0
    %2991 = vmatpush1.msra.mxu0 0.0
    %2992 = vmatprep.subr.mxu0 0.0
    %2993 = vmatpush1.msra.mxu0 0.0
    %2994 = vmatprep.subr.mxu0 0.0
    %2995 = vmatpush1.msra.mxu0 0.0
    %2996 = vmatprep.subr.mxu0 0.0
    %2997 = vmatpush1.msra.mxu0 0.0
    %2998 = vmatprep.subr.mxu0 0.0
    %2999 = vmatpush1.msra.mxu0 0.0
    %3000 = vmatprep.subr.mxu0 0.0
    %3001 = vmatpush1.msra.mxu0 0.0
    %3002 = vmatprep.subr.mxu0 0.0
    %3003 = vmatpush1.msra.mxu0 0.0
    %3004 = vmatprep.subr.mxu0 0.0
    %3005 = vmatpush1.msra.mxu0 0.0
    %3006 = vmatprep.subr.mxu0 0.0
    %3007 = vmatpush1.msra.mxu0 0.0
    %3008 = vmatprep.subr.mxu0 0.0
    %3009 = vmatpush1.msra.mxu0 0.0
    %3010 = vmatprep.mubr.f32.mxu0 0.0
    %v3011 = vand.u32 %v2530, 4294901760
    %3012 = vmatmul.mubr.f32.gmra.mrb[0].mxu0 %v3011
    %v3013 = vpop.f32.mrb[0].mxu0
    %v3014 = vadd.f32 %v2939, %v3013
    %v3015 = vpop.f32.mrb[0].mxu0
    %3016 = vdwg.mxu0
    %v3017 = vmax.f32 %v3014, 0.0
    %s3018 = sld [smem:[#allocation2]]
    %v3019 = vstv %s3018
    %v3020 = vadd.f32 %v3017, %v3019
    %3021 = vst.msk [vmem:[#allocation8] sm:$0xff] %vm61, %v3020
    // Predicated region
    $region26: #{tpu_custom_call.1} parent=1 // pred_check
      _
    $region27: #{tpu_custom_call.1} parent=1 // pred_check_branch
      %3023 = sbr.rel (0) target = $region29
    $region28: #{tpu_custom_call.1} parent=1 // pred_region
      %s3025 = ssub.s32 128, 128
      %3026 = vsyncadd [#allocation5], %s3025
      %s3028 = sshll.u32 [#allocation8], 4
      %s3029 = int_to_ptr.vmem [resolvable:$true] %s3028
      %3031 = dma.vmem_to_hbm [thread:$0]  %s3029, 128, %s4, [#allocation5]
    $region29: #{tpu_custom_call.1} parent=1 // pred_fallthru
      _
    // Predicated region
    $region30: #{tpu_custom_call.1} parent=1 // pred_check
      _
    $region31: #{tpu_custom_call.1} parent=1 // pred_check_branch
      %3033 = sbr.rel (0) target = $region33
    $region32: #{tpu_custom_call.1} parent=1 // pred_region
      %3034 = dma.done [#allocation5], 128
    $region33: #{tpu_custom_call.1} parent=1 // pred_fallthru
      _
    %3035 = vsyncpa [#allocation4], 1
    %3036 = vsyncpa [#allocation7], 1
    %3037 = vsyncpa [#allocation5], 1

</llo_original>
